<compile_context>
chip_gen: v5e
topology: v5e:2x2
jax: 0.10.0
libtpu: 0.0.40
codegen_flags: <defaults>
</compile_context>

<pallas_src>
import functools
import math

import jax
import jax.numpy as jnp
from jax import lax
from jax.experimental import pallas as pl
from jax.experimental.pallas import tpu as pltpu

LANES = 128


def _round_up(x, m):
    return (x + m - 1) // m * m


# ---------------------------------------------------------------------------
# Single fused kernel: embedding gather + 2x bidirectional RNN layers + head.
#   refs = [ids, emb_table, (wih, b, whh) * num_layers, w2a, w2b, b2, wfc, bfc,
#           out, hbuf_scratch]
#   ids is time-major, batch-padded: row index = t * batch_p + b, shape (seq*Bp, 1).
# ---------------------------------------------------------------------------
def _textrnn_kernel(seq, batch_p, hidden, num_layers, *refs):
    H = hidden
    SB = seq * batch_p

    n_in = 2 + 3 * num_layers + 5
    ids_ref, embt_ref = refs[0], refs[1]
    layer_refs = refs[2:2 + 3 * num_layers]
    w2a_ref, w2b_ref, b2_ref, wfc_ref, bfc_ref = refs[2 + 3 * num_layers:n_in]
    out_ref = refs[n_in]
    hbuf = refs[n_in + 1]                                   # (SB, 128) VMEM scratch

    # ---- fused embedding gather: one-hot(ids) @ table (one tiny MXU matmul).
    # Table values pass through a bf16 MXU pass at default precision -- identical to what every
    # downstream GEMM would do to them anyway, so end-to-end numerics are unchanged.
    v_pad = embt_ref.shape[0]
    ids = ids_ref[...]                                      # (SB, 1) int32
    vocab_iota = lax.broadcasted_iota(jnp.int32, (SB, v_pad), 1)
    one_hot = (vocab_iota == ids).astype(jnp.float32)       # (SB, v_pad)
    emb = jnp.dot(one_hot, embt_ref[...],
                  preferred_element_type=jnp.float32)       # (SB, E)

    # Lane mask selecting the backward-direction columns [H, 2H).
    lane = lax.broadcasted_iota(jnp.int32, (SB, LANES), 1)
    bwd_mask = (lane >= H) & (lane < 2 * H)

    def reverse_time_blocks(v):
        # Reverse the order of the seq row blocks (each block = batch_p sublanes).
        return jnp.concatenate(
            [v[(seq - 1 - s) * batch_p:(seq - s) * batch_p, :] for s in range(seq)],
            axis=0)

    feats = emb                                             # layer-0 input (SB, E)
    for l in range(num_layers):
        wih_ref, b_ref, whh_ref = layer_refs[3 * l:3 * l + 3]

        # Hoisted input projection: ONE GEMM for the whole sequence, both directions,
        # bias (b_ih + b_hh) folded in, padded to 128 lanes (cols [2H:] stay zero).
        xproj = (jnp.dot(feats, wih_ref[...], preferred_element_type=jnp.float32)
                 + b_ref[...])                              # (SB, 128)

        # Pre-permute ONCE (off the per-step chain): time-reverse only the backward columns,
        # so every recurrence step reads a single contiguous sublane-aligned row block.
        xperm = jnp.where(bwd_mask, reverse_time_blocks(xproj), xproj)

        whh = whh_ref[...]                                  # (128,128) zero-padded block-diag
        h = jnp.zeros((batch_p, LANES), jnp.float32)        # [h_fwd | h_bwd | 0-pad]
        for s in range(seq):                                # static unroll; seq is small
            xin = xperm[s * batch_p:(s + 1) * batch_p, :]   # (Bp, 128), free vreg pick
            # Only this matmul is inherently sequential.  Default MXU precision; use
            # precision=HIGHEST here if bit-parity with a f32 reference is required.
            h = jnp.tanh(xin + jnp.dot(h, whh, preferred_element_type=jnp.float32))
            hbuf[s * batch_p:(s + 1) * batch_p, :] = h      # one lane-dense (8,128) store
        # TODO(synk): hold whh resident in the MXU across the unrolled steps via
        # pltpu.matmul_push_rhs / matmul_acc_lhs / matmul_pop to shave the per-step
        # weight-push latency from the serial chain.

        # Un-reverse the backward columns once, giving time-correct [h_f(t) | h_b(t) | 0].
        raw = hbuf[...]
        feats = jnp.where(bwd_mask, reverse_time_blocks(raw), raw)   # (SB, 128)

    # Head: y2 = tanh(rnn_out @ W2a + emb @ W2b + b2); max over seq; logits = pooled @ Wfc + bfc.
    y2 = jnp.tanh(jnp.dot(feats, w2a_ref[...], preferred_element_type=jnp.float32)
                  + jnp.dot(emb, w2b_ref[...], preferred_element_type=jnp.float32)
                  + b2_ref[...])                            # (SB, 128), cols [2H:] are 0
    pooled = y2[:batch_p, :]
    for t in range(1, seq):                                 # max_pool1d over the sequence
        pooled = jnp.maximum(pooled, y2[t * batch_p:(t + 1) * batch_p, :])
    logits = (jnp.dot(pooled, wfc_ref[...], preferred_element_type=jnp.float32)
              + bfc_ref[...])                               # (Bp, O_pad) lane-dense store
    out_ref[...] = logits.astype(out_ref.dtype)


def textrnn_fused_call(ids2d, fused, *, seq, batch_p):
    """ids2d: (seq*batch_p, 1) int32 token ids. Returns padded logits (batch_p, O_pad)."""
    hidden = fused["hidden"]
    num_layers = len(fused["rnn"])
    flat_rnn = [w for layer in fused["rnn"] for w in layer]
    inputs = [ids2d, fused["emb_pad"]] + flat_rnn + [
        fused["w2a_pad"], fused["w2b_pad"], fused["b2_pad"],
        fused["wfc_pad"], fused["bfc_pad"]]
    o_pad = fused["wfc_pad"].shape[1]
    kernel = functools.partial(_textrnn_kernel, seq, batch_p, hidden, num_layers)
    return pl.pallas_call(
        kernel,
        out_shape=jax.ShapeDtypeStruct((batch_p, o_pad), jnp.float32),
        in_specs=[pl.BlockSpec(memory_space=pltpu.MemorySpace.VMEM)] * len(inputs),
        out_specs=pl.BlockSpec(memory_space=pltpu.MemorySpace.VMEM),
        scratch_shapes=[pltpu.VMEM((seq * batch_p, LANES), jnp.float32)],
    )(*inputs)


# ---------------------------------------------------------------------------
# Parameters (deterministic, synthetic) + one-time fusion/packing for the kernel
# ---------------------------------------------------------------------------
def init_params(key, vocab_size, emb_dim, output_dim, hidden, num_layers):
    keys = iter(jax.random.split(key, 128))

    def unif(shape, k):
        return jax.random.uniform(next(keys), shape, jnp.float32, -k, k)

    params = {"hidden": hidden, "output_dim": output_dim}
    params["embedding"] = jax.random.normal(next(keys), (vocab_size, emb_dim), jnp.float32)

    k_rnn = 1.0 / math.sqrt(hidden)
    rnn = []
    for layer_idx in range(num_layers):
        in_dim = emb_dim if layer_idx == 0 else 2 * hidden
        layer = []
        for _direction in range(2):                         # forward, backward
            wih_t = unif((in_dim, hidden), k_rnn)           # W_ih^T
            whh_t = unif((hidden, hidden), k_rnn)           # W_hh^T
            b = unif((hidden,), k_rnn) + unif((hidden,), k_rnn)   # b_ih + b_hh
            layer.append((wih_t, whh_t, b))
        rnn.append(layer)
    params["rnn"] = rnn

    feat_dim = 2 * hidden + emb_dim
    k_w2 = 1.0 / math.sqrt(feat_dim)
    params["w2_t"] = unif((feat_dim, 2 * hidden), k_w2)
    params["b2"] = unif((2 * hidden,), k_w2)

    k_fc = 1.0 / math.sqrt(2 * hidden)
    params["wfc_t"] = unif((2 * hidden, output_dim), k_fc)
    params["bfc"] = unif((output_dim,), k_fc)
    return params


def fuse_params(params):
    """Build kernel-ready fused / lane-padded weights (done once, off the hot path)."""
    H = params["hidden"]
    H2 = 2 * H
    O = params["output_dim"]
    f32 = jnp.float32

    emb = params["embedding"]
    V, E = emb.shape

    fused = {"hidden": H, "output_dim": O}

    # Embedding table padded to a lane-multiple row count (extra rows never selected).
    v_pad = _round_up(max(V, LANES), LANES)
    fused["emb_pad"] = jnp.zeros((v_pad, E), f32).at[:V, :].set(emb)

    rnn_fused = []
    for layer_idx, ((wih_f, whh_f, b_f), (wih_b, whh_b, b_b)) in enumerate(params["rnn"]):
        in_dim = wih_f.shape[0]
        # Layers >= 1 consume the 128-lane padded state directly (extra K rows are zero).
        k_pad = in_dim if layer_idx == 0 else LANES
        wih_pad = (jnp.zeros((k_pad, LANES), f32)
                   .at[:in_dim, :H].set(wih_f)
                   .at[:in_dim, H:H2].set(wih_b))           # (K, 128): [Wih_f | Wih_b | 0]
        b_pad = (jnp.zeros((1, LANES), f32)
                 .at[0, :H].set(b_f)
                 .at[0, H:H2].set(b_b))                      # (1, 128)
        whh_pad = (jnp.zeros((LANES, LANES), f32)
                   .at[:H, :H].set(whh_f)
                   .at[H:H2, H:H2].set(whh_b))               # (128,128) block-diag, zero-padded
        rnn_fused.append((wih_pad, b_pad, whh_pad))
    fused["rnn"] = rnn_fused

    # Head: W2 split into the rnn_out block and the emb block (no lane concat in-kernel).
    w2_t = params["w2_t"]                                    # (2H+E, 2H)
    fused["w2a_pad"] = jnp.zeros((LANES, LANES), f32).at[:H2, :H2].set(w2_t[:H2])
    fused["w2b_pad"] = jnp.zeros((E, LANES), f32).at[:, :H2].set(w2_t[H2:])
    fused["b2_pad"] = jnp.zeros((1, LANES), f32).at[0, :H2].set(params["b2"])

    o_pad = _round_up(max(O, LANES), LANES)                  # lane-dense final store
    fused["wfc_pad"] = jnp.zeros((LANES, o_pad), f32).at[:H2, :O].set(params["wfc_t"])
    fused["bfc_pad"] = jnp.zeros((1, o_pad), f32).at[0, :O].set(params["bfc"])
    return fused


# ---------------------------------------------------------------------------
# Full forward pass
# ---------------------------------------------------------------------------
def text_rnn_forward(fused, x):
    # x: (batch, seq) int32 token ids
    batch, seq = x.shape
    batch_p = _round_up(batch, 8)                            # pad batch to a sublane multiple
    text = x.T                                               # (seq, batch)
    ids_p = jnp.pad(text, ((0, 0), (0, batch_p - batch)))    # padded rows discarded at the end
    ids2d = ids_p.reshape(seq * batch_p, 1).astype(jnp.int32)   # time-major rows: t*Bp + b
    logits_p = textrnn_fused_call(ids2d, fused, seq=seq, batch_p=batch_p)
    return logits_p[:batch, :fused["output_dim"]]


if __name__ == "__main__":
    vocab_size = 50
    embedding_dim = 16
    output_dim = 4
    hidden_size = 32
    num_layers = 2
    batch, seq = 2, 8

    key = jax.random.PRNGKey(0)
    pkey, xkey = jax.random.split(key)
    params = init_params(pkey, vocab_size, embedding_dim, output_dim, hidden_size, num_layers)
    fused = fuse_params(params)
    x = jax.random.randint(xkey, (batch, seq), 0, vocab_size, dtype=jnp.int32)

    fwd = jax.jit(functools.partial(text_rnn_forward, fused))
    logits = fwd(x)
    jax.block_until_ready(logits)
    assert logits.shape == (batch, output_dim), logits.shape
    print("KERNEL_OK")
</pallas_src>

<mosaic_0001>
module attributes {stable_mosaic.version = 11 : i64} {
  func.func @_textrnn_kernel(%arg0: memref<64x1xi32, #tpu.memory_space<vmem>>, %arg1: memref<128x16xf32, #tpu.memory_space<vmem>>, %arg2: memref<16x128xf32, #tpu.memory_space<vmem>>, %arg3: memref<1x128xf32, #tpu.memory_space<vmem>>, %arg4: memref<128x128xf32, #tpu.memory_space<vmem>>, %arg5: memref<128x128xf32, #tpu.memory_space<vmem>>, %arg6: memref<1x128xf32, #tpu.memory_space<vmem>>, %arg7: memref<128x128xf32, #tpu.memory_space<vmem>>, %arg8: memref<128x128xf32, #tpu.memory_space<vmem>>, %arg9: memref<16x128xf32, #tpu.memory_space<vmem>>, %arg10: memref<1x128xf32, #tpu.memory_space<vmem>>, %arg11: memref<128x128xf32, #tpu.memory_space<vmem>>, %arg12: memref<1x128xf32, #tpu.memory_space<vmem>>, %arg13: memref<8x128xf32, #tpu.memory_space<vmem>>, %arg14: memref<64x128xf32, #tpu.memory_space<vmem>>) attributes {dimension_semantics = [], scalar_prefetch = 0 : i64, scratch_operands = 1 : i64, tpu.core_type = #tpu.core_type<tc>} {
    %c0 = arith.constant 0 : index
    %c0_0 = arith.constant 0 : index
    %0 = vector.load %arg0[%c0, %c0_0] : memref<64x1xi32, #tpu.memory_space<vmem>>, vector<64x1xi32>
    %1 = tpu.iota {dimensions = array<i32: 1>} : vector<64x128xi32>
    %2 = vector.broadcast %0 : vector<64x1xi32> to vector<64x128xi32>
    %3 = arith.cmpi eq, %1, %2 : vector<64x128xi32>
    %4 = arith.extui %3 : vector<64x128xi1> to vector<64x128xi32>
    %5 = arith.sitofp %4 : vector<64x128xi32> to vector<64x128xf32>
    %c0_1 = arith.constant 0 : index
    %c0_2 = arith.constant 0 : index
    %6 = vector.load %arg1[%c0_1, %c0_2] : memref<128x16xf32, #tpu.memory_space<vmem>>, vector<128x16xf32>
    %cst = arith.constant dense<0.000000e+00> : vector<64x16xf32>
    %7 = tpu.matmul %5, %6, %cst {dimension_numbers = #tpu.dot_dimension_numbers<[1], [0], [0], [1], [0, 0, 1, 1], [], []>} : vector<64x128xf32>, vector<128x16xf32>, vector<64x16xf32> -> vector<64x16xf32>
    %8 = tpu.iota {dimensions = array<i32: 1>} : vector<64x128xi32>
    %c32_i32 = arith.constant 32 : i32
    %9 = vector.broadcast %c32_i32 : i32 to vector<64x128xi32>
    %10 = arith.cmpi sge, %8, %9 : vector<64x128xi32>
    %c64_i32 = arith.constant 64 : i32
    %11 = vector.broadcast %c64_i32 : i32 to vector<64x128xi32>
    %12 = arith.cmpi slt, %8, %11 : vector<64x128xi32>
    %13 = arith.andi %10, %12 : vector<64x128xi1>
    %c0_3 = arith.constant 0 : index
    %c0_4 = arith.constant 0 : index
    %14 = vector.load %arg2[%c0_3, %c0_4] : memref<16x128xf32, #tpu.memory_space<vmem>>, vector<16x128xf32>
    %cst_5 = arith.constant dense<0.000000e+00> : vector<64x128xf32>
    %15 = tpu.matmul %7, %14, %cst_5 {dimension_numbers = #tpu.dot_dimension_numbers<[1], [0], [0], [1], [0, 0, 1, 1], [], []>} : vector<64x16xf32>, vector<16x128xf32>, vector<64x128xf32> -> vector<64x128xf32>
    %c0_6 = arith.constant 0 : index
    %c0_7 = arith.constant 0 : index
    %16 = vector.load %arg3[%c0_6, %c0_7] : memref<1x128xf32, #tpu.memory_space<vmem>>, vector<1x128xf32>
    %17 = vector.broadcast %16 : vector<1x128xf32> to vector<64x128xf32>
    %18 = arith.addf %15, %17 : vector<64x128xf32>
    %19 = vector.extract_strided_slice %18 {offsets = [56, 0], sizes = [8, 128], strides = [1, 1]} : vector<64x128xf32> to vector<8x128xf32>
    %20 = vector.extract_strided_slice %18 {offsets = [48, 0], sizes = [8, 128], strides = [1, 1]} : vector<64x128xf32> to vector<8x128xf32>
    %21 = vector.extract_strided_slice %18 {offsets = [40, 0], sizes = [8, 128], strides = [1, 1]} : vector<64x128xf32> to vector<8x128xf32>
    %22 = vector.extract_strided_slice %18 {offsets = [32, 0], sizes = [8, 128], strides = [1, 1]} : vector<64x128xf32> to vector<8x128xf32>
    %23 = vector.extract_strided_slice %18 {offsets = [24, 0], sizes = [8, 128], strides = [1, 1]} : vector<64x128xf32> to vector<8x128xf32>
    %24 = vector.extract_strided_slice %18 {offsets = [16, 0], sizes = [8, 128], strides = [1, 1]} : vector<64x128xf32> to vector<8x128xf32>
    %25 = vector.extract_strided_slice %18 {offsets = [8, 0], sizes = [8, 128], strides = [1, 1]} : vector<64x128xf32> to vector<8x128xf32>
    %26 = vector.extract_strided_slice %18 {offsets = [0, 0], sizes = [8, 128], strides = [1, 1]} : vector<64x128xf32> to vector<8x128xf32>
    %27 = tpu.concatenate %19, %20, %21, %22, %23, %24, %25, %26 in 0 : vector<8x128xf32>, vector<8x128xf32>, vector<8x128xf32>, vector<8x128xf32>, vector<8x128xf32>, vector<8x128xf32>, vector<8x128xf32>, vector<8x128xf32> -> vector<64x128xf32>
    %28 = arith.select %13, %27, %18 : vector<64x128xi1>, vector<64x128xf32>
    %c0_8 = arith.constant 0 : index
    %c0_9 = arith.constant 0 : index
    %29 = vector.load %arg4[%c0_8, %c0_9] : memref<128x128xf32, #tpu.memory_space<vmem>>, vector<128x128xf32>
    %cst_10 = arith.constant 0.000000e+00 : f32
    %30 = vector.broadcast %cst_10 : f32 to vector<8x128xf32>
    %31 = vector.extract_strided_slice %28 {offsets = [0, 0], sizes = [8, 128], strides = [1, 1]} : vector<64x128xf32> to vector<8x128xf32>
    %cst_11 = arith.constant dense<0.000000e+00> : vector<8x128xf32>
    %32 = tpu.matmul %30, %29, %cst_11 {dimension_numbers = #tpu.dot_dimension_numbers<[1], [0], [0], [1], [0, 0, 1, 1], [], []>} : vector<8x128xf32>, vector<128x128xf32>, vector<8x128xf32> -> vector<8x128xf32>
    %33 = arith.addf %31, %32 : vector<8x128xf32>
    %34 = math.tanh %33 : vector<8x128xf32>
    %c0_12 = arith.constant 0 : index
    %c0_13 = arith.constant 0 : index
    %35 = vector.load %arg14[%c0_12, %c0_13] : memref<64x128xf32, #tpu.memory_space<vmem>>, vector<8x128xf32>
    tpu.vector_store %arg14[%c0_12, %c0_13], %34 {strides = array<i32>} : memref<64x128xf32, #tpu.memory_space<vmem>>, vector<8x128xf32>,
    %36 = vector.extract_strided_slice %28 {offsets = [8, 0], sizes = [8, 128], strides = [1, 1]} : vector<64x128xf32> to vector<8x128xf32>
    %cst_14 = arith.constant dense<0.000000e+00> : vector<8x128xf32>
    %37 = tpu.matmul %34, %29, %cst_14 {dimension_numbers = #tpu.dot_dimension_numbers<[1], [0], [0], [1], [0, 0, 1, 1], [], []>} : vector<8x128xf32>, vector<128x128xf32>, vector<8x128xf32> -> vector<8x128xf32>
    %38 = arith.addf %36, %37 : vector<8x128xf32>
    %39 = math.tanh %38 : vector<8x128xf32>
    %c8 = arith.constant 8 : index
    %c0_15 = arith.constant 0 : index
    %40 = vector.load %arg14[%c8, %c0_15] : memref<64x128xf32, #tpu.memory_space<vmem>>, vector<8x128xf32>
    tpu.vector_store %arg14[%c8, %c0_15], %39 {strides = array<i32>} : memref<64x128xf32, #tpu.memory_space<vmem>>, vector<8x128xf32>,
    %41 = vector.extract_strided_slice %28 {offsets = [16, 0], sizes = [8, 128], strides = [1, 1]} : vector<64x128xf32> to vector<8x128xf32>
    %cst_16 = arith.constant dense<0.000000e+00> : vector<8x128xf32>
    %42 = tpu.matmul %39, %29, %cst_16 {dimension_numbers = #tpu.dot_dimension_numbers<[1], [0], [0], [1], [0, 0, 1, 1], [], []>} : vector<8x128xf32>, vector<128x128xf32>, vector<8x128xf32> -> vector<8x128xf32>
    %43 = arith.addf %41, %42 : vector<8x128xf32>
    %44 = math.tanh %43 : vector<8x128xf32>
    %c16 = arith.constant 16 : index
    %c0_17 = arith.constant 0 : index
    %45 = vector.load %arg14[%c16, %c0_17] : memref<64x128xf32, #tpu.memory_space<vmem>>, vector<8x128xf32>
    tpu.vector_store %arg14[%c16, %c0_17], %44 {strides = array<i32>} : memref<64x128xf32, #tpu.memory_space<vmem>>, vector<8x128xf32>,
    %46 = vector.extract_strided_slice %28 {offsets = [24, 0], sizes = [8, 128], strides = [1, 1]} : vector<64x128xf32> to vector<8x128xf32>
    %cst_18 = arith.constant dense<0.000000e+00> : vector<8x128xf32>
    %47 = tpu.matmul %44, %29, %cst_18 {dimension_numbers = #tpu.dot_dimension_numbers<[1], [0], [0], [1], [0, 0, 1, 1], [], []>} : vector<8x128xf32>, vector<128x128xf32>, vector<8x128xf32> -> vector<8x128xf32>
    %48 = arith.addf %46, %47 : vector<8x128xf32>
    %49 = math.tanh %48 : vector<8x128xf32>
    %c24 = arith.constant 24 : index
    %c0_19 = arith.constant 0 : index
    %50 = vector.load %arg14[%c24, %c0_19] : memref<64x128xf32, #tpu.memory_space<vmem>>, vector<8x128xf32>
    tpu.vector_store %arg14[%c24, %c0_19], %49 {strides = array<i32>} : memref<64x128xf32, #tpu.memory_space<vmem>>, vector<8x128xf32>,
    %51 = vector.extract_strided_slice %28 {offsets = [32, 0], sizes = [8, 128], strides = [1, 1]} : vector<64x128xf32> to vector<8x128xf32>
    %cst_20 = arith.constant dense<0.000000e+00> : vector<8x128xf32>
    %52 = tpu.matmul %49, %29, %cst_20 {dimension_numbers = #tpu.dot_dimension_numbers<[1], [0], [0], [1], [0, 0, 1, 1], [], []>} : vector<8x128xf32>, vector<128x128xf32>, vector<8x128xf32> -> vector<8x128xf32>
    %53 = arith.addf %51, %52 : vector<8x128xf32>
    %54 = math.tanh %53 : vector<8x128xf32>
    %c32 = arith.constant 32 : index
    %c0_21 = arith.constant 0 : index
    %55 = vector.load %arg14[%c32, %c0_21] : memref<64x128xf32, #tpu.memory_space<vmem>>, vector<8x128xf32>
    tpu.vector_store %arg14[%c32, %c0_21], %54 {strides = array<i32>} : memref<64x128xf32, #tpu.memory_space<vmem>>, vector<8x128xf32>,
    %56 = vector.extract_strided_slice %28 {offsets = [40, 0], sizes = [8, 128], strides = [1, 1]} : vector<64x128xf32> to vector<8x128xf32>
    %cst_22 = arith.constant dense<0.000000e+00> : vector<8x128xf32>
    %57 = tpu.matmul %54, %29, %cst_22 {dimension_numbers = #tpu.dot_dimension_numbers<[1], [0], [0], [1], [0, 0, 1, 1], [], []>} : vector<8x128xf32>, vector<128x128xf32>, vector<8x128xf32> -> vector<8x128xf32>
    %58 = arith.addf %56, %57 : vector<8x128xf32>
    %59 = math.tanh %58 : vector<8x128xf32>
    %c40 = arith.constant 40 : index
    %c0_23 = arith.constant 0 : index
    %60 = vector.load %arg14[%c40, %c0_23] : memref<64x128xf32, #tpu.memory_space<vmem>>, vector<8x128xf32>
    tpu.vector_store %arg14[%c40, %c0_23], %59 {strides = array<i32>} : memref<64x128xf32, #tpu.memory_space<vmem>>, vector<8x128xf32>,
    %61 = vector.extract_strided_slice %28 {offsets = [48, 0], sizes = [8, 128], strides = [1, 1]} : vector<64x128xf32> to vector<8x128xf32>
    %cst_24 = arith.constant dense<0.000000e+00> : vector<8x128xf32>
    %62 = tpu.matmul %59, %29, %cst_24 {dimension_numbers = #tpu.dot_dimension_numbers<[1], [0], [0], [1], [0, 0, 1, 1], [], []>} : vector<8x128xf32>, vector<128x128xf32>, vector<8x128xf32> -> vector<8x128xf32>
    %63 = arith.addf %61, %62 : vector<8x128xf32>
    %64 = math.tanh %63 : vector<8x128xf32>
    %c48 = arith.constant 48 : index
    %c0_25 = arith.constant 0 : index
    %65 = vector.load %arg14[%c48, %c0_25] : memref<64x128xf32, #tpu.memory_space<vmem>>, vector<8x128xf32>
    tpu.vector_store %arg14[%c48, %c0_25], %64 {strides = array<i32>} : memref<64x128xf32, #tpu.memory_space<vmem>>, vector<8x128xf32>,
    %66 = vector.extract_strided_slice %28 {offsets = [56, 0], sizes = [8, 128], strides = [1, 1]} : vector<64x128xf32> to vector<8x128xf32>
    %cst_26 = arith.constant dense<0.000000e+00> : vector<8x128xf32>
    %67 = tpu.matmul %64, %29, %cst_26 {dimension_numbers = #tpu.dot_dimension_numbers<[1], [0], [0], [1], [0, 0, 1, 1], [], []>} : vector<8x128xf32>, vector<128x128xf32>, vector<8x128xf32> -> vector<8x128xf32>
    %68 = arith.addf %66, %67 : vector<8x128xf32>
    %69 = math.tanh %68 : vector<8x128xf32>
    %c56 = arith.constant 56 : index
    %c0_27 = arith.constant 0 : index
    %70 = vector.load %arg14[%c56, %c0_27] : memref<64x128xf32, #tpu.memory_space<vmem>>, vector<8x128xf32>
    tpu.vector_store %arg14[%c56, %c0_27], %69 {strides = array<i32>} : memref<64x128xf32, #tpu.memory_space<vmem>>, vector<8x128xf32>,
    %c0_28 = arith.constant 0 : index
    %c0_29 = arith.constant 0 : index
    %71 = vector.load %arg14[%c0_28, %c0_29] : memref<64x128xf32, #tpu.memory_space<vmem>>, vector<64x128xf32>
    %72 = vector.extract_strided_slice %71 {offsets = [56, 0], sizes = [8, 128], strides = [1, 1]} : vector<64x128xf32> to vector<8x128xf32>
    %73 = vector.extract_strided_slice %71 {offsets = [48, 0], sizes = [8, 128], strides = [1, 1]} : vector<64x128xf32> to vector<8x128xf32>
    %74 = vector.extract_strided_slice %71 {offsets = [40, 0], sizes = [8, 128], strides = [1, 1]} : vector<64x128xf32> to vector<8x128xf32>
    %75 = vector.extract_strided_slice %71 {offsets = [32, 0], sizes = [8, 128], strides = [1, 1]} : vector<64x128xf32> to vector<8x128xf32>
    %76 = vector.extract_strided_slice %71 {offsets = [24, 0], sizes = [8, 128], strides = [1, 1]} : vector<64x128xf32> to vector<8x128xf32>
    %77 = vector.extract_strided_slice %71 {offsets = [16, 0], sizes = [8, 128], strides = [1, 1]} : vector<64x128xf32> to vector<8x128xf32>
    %78 = vector.extract_strided_slice %71 {offsets = [8, 0], sizes = [8, 128], strides = [1, 1]} : vector<64x128xf32> to vector<8x128xf32>
    %79 = vector.extract_strided_slice %71 {offsets = [0, 0], sizes = [8, 128], strides = [1, 1]} : vector<64x128xf32> to vector<8x128xf32>
    %80 = tpu.concatenate %72, %73, %74, %75, %76, %77, %78, %79 in 0 : vector<8x128xf32>, vector<8x128xf32>, vector<8x128xf32>, vector<8x128xf32>, vector<8x128xf32>, vector<8x128xf32>, vector<8x128xf32>, vector<8x128xf32> -> vector<64x128xf32>
    %81 = arith.select %13, %80, %71 : vector<64x128xi1>, vector<64x128xf32>
    %c0_30 = arith.constant 0 : index
    %c0_31 = arith.constant 0 : index
    %82 = vector.load %arg5[%c0_30, %c0_31] : memref<128x128xf32, #tpu.memory_space<vmem>>, vector<128x128xf32>
    %cst_32 = arith.constant dense<0.000000e+00> : vector<64x128xf32>
    %83 = tpu.matmul %81, %82, %cst_32 {dimension_numbers = #tpu.dot_dimension_numbers<[1], [0], [0], [1], [0, 0, 1, 1], [], []>} : vector<64x128xf32>, vector<128x128xf32>, vector<64x128xf32> -> vector<64x128xf32>
    %c0_33 = arith.constant 0 : index
    %c0_34 = arith.constant 0 : index
    %84 = vector.load %arg6[%c0_33, %c0_34] : memref<1x128xf32, #tpu.memory_space<vmem>>, vector<1x128xf32>
    %85 = vector.broadcast %84 : vector<1x128xf32> to vector<64x128xf32>
    %86 = arith.addf %83, %85 : vector<64x128xf32>
    %87 = vector.extract_strided_slice %86 {offsets = [56, 0], sizes = [8, 128], strides = [1, 1]} : vector<64x128xf32> to vector<8x128xf32>
    %88 = vector.extract_strided_slice %86 {offsets = [48, 0], sizes = [8, 128], strides = [1, 1]} : vector<64x128xf32> to vector<8x128xf32>
    %89 = vector.extract_strided_slice %86 {offsets = [40, 0], sizes = [8, 128], strides = [1, 1]} : vector<64x128xf32> to vector<8x128xf32>
    %90 = vector.extract_strided_slice %86 {offsets = [32, 0], sizes = [8, 128], strides = [1, 1]} : vector<64x128xf32> to vector<8x128xf32>
    %91 = vector.extract_strided_slice %86 {offsets = [24, 0], sizes = [8, 128], strides = [1, 1]} : vector<64x128xf32> to vector<8x128xf32>
    %92 = vector.extract_strided_slice %86 {offsets = [16, 0], sizes = [8, 128], strides = [1, 1]} : vector<64x128xf32> to vector<8x128xf32>
    %93 = vector.extract_strided_slice %86 {offsets = [8, 0], sizes = [8, 128], strides = [1, 1]} : vector<64x128xf32> to vector<8x128xf32>
    %94 = vector.extract_strided_slice %86 {offsets = [0, 0], sizes = [8, 128], strides = [1, 1]} : vector<64x128xf32> to vector<8x128xf32>
    %95 = tpu.concatenate %87, %88, %89, %90, %91, %92, %93, %94 in 0 : vector<8x128xf32>, vector<8x128xf32>, vector<8x128xf32>, vector<8x128xf32>, vector<8x128xf32>, vector<8x128xf32>, vector<8x128xf32>, vector<8x128xf32> -> vector<64x128xf32>
    %96 = arith.select %13, %95, %86 : vector<64x128xi1>, vector<64x128xf32>
    %c0_35 = arith.constant 0 : index
    %c0_36 = arith.constant 0 : index
    %97 = vector.load %arg7[%c0_35, %c0_36] : memref<128x128xf32, #tpu.memory_space<vmem>>, vector<128x128xf32>
    %cst_37 = arith.constant 0.000000e+00 : f32
    %98 = vector.broadcast %cst_37 : f32 to vector<8x128xf32>
    %99 = vector.extract_strided_slice %96 {offsets = [0, 0], sizes = [8, 128], strides = [1, 1]} : vector<64x128xf32> to vector<8x128xf32>
    %cst_38 = arith.constant dense<0.000000e+00> : vector<8x128xf32>
    %100 = tpu.matmul %98, %97, %cst_38 {dimension_numbers = #tpu.dot_dimension_numbers<[1], [0], [0], [1], [0, 0, 1, 1], [], []>} : vector<8x128xf32>, vector<128x128xf32>, vector<8x128xf32> -> vector<8x128xf32>
    %101 = arith.addf %99, %100 : vector<8x128xf32>
    %102 = math.tanh %101 : vector<8x128xf32>
    %c0_39 = arith.constant 0 : index
    %c0_40 = arith.constant 0 : index
    %103 = vector.load %arg14[%c0_39, %c0_40] : memref<64x128xf32, #tpu.memory_space<vmem>>, vector<8x128xf32>
    tpu.vector_store %arg14[%c0_39, %c0_40], %102 {strides = array<i32>} : memref<64x128xf32, #tpu.memory_space<vmem>>, vector<8x128xf32>,
    %104 = vector.extract_strided_slice %96 {offsets = [8, 0], sizes = [8, 128], strides = [1, 1]} : vector<64x128xf32> to vector<8x128xf32>
    %cst_41 = arith.constant dense<0.000000e+00> : vector<8x128xf32>
    %105 = tpu.matmul %102, %97, %cst_41 {dimension_numbers = #tpu.dot_dimension_numbers<[1], [0], [0], [1], [0, 0, 1, 1], [], []>} : vector<8x128xf32>, vector<128x128xf32>, vector<8x128xf32> -> vector<8x128xf32>
    %106 = arith.addf %104, %105 : vector<8x128xf32>
    %107 = math.tanh %106 : vector<8x128xf32>
    %c8_42 = arith.constant 8 : index
    %c0_43 = arith.constant 0 : index
    %108 = vector.load %arg14[%c8_42, %c0_43] : memref<64x128xf32, #tpu.memory_space<vmem>>, vector<8x128xf32>
    tpu.vector_store %arg14[%c8_42, %c0_43], %107 {strides = array<i32>} : memref<64x128xf32, #tpu.memory_space<vmem>>, vector<8x128xf32>,
    %109 = vector.extract_strided_slice %96 {offsets = [16, 0], sizes = [8, 128], strides = [1, 1]} : vector<64x128xf32> to vector<8x128xf32>
    %cst_44 = arith.constant dense<0.000000e+00> : vector<8x128xf32>
    %110 = tpu.matmul %107, %97, %cst_44 {dimension_numbers = #tpu.dot_dimension_numbers<[1], [0], [0], [1], [0, 0, 1, 1], [], []>} : vector<8x128xf32>, vector<128x128xf32>, vector<8x128xf32> -> vector<8x128xf32>
    %111 = arith.addf %109, %110 : vector<8x128xf32>
    %112 = math.tanh %111 : vector<8x128xf32>
    %c16_45 = arith.constant 16 : index
    %c0_46 = arith.constant 0 : index
    %113 = vector.load %arg14[%c16_45, %c0_46] : memref<64x128xf32, #tpu.memory_space<vmem>>, vector<8x128xf32>
    tpu.vector_store %arg14[%c16_45, %c0_46], %112 {strides = array<i32>} : memref<64x128xf32, #tpu.memory_space<vmem>>, vector<8x128xf32>,
    %114 = vector.extract_strided_slice %96 {offsets = [24, 0], sizes = [8, 128], strides = [1, 1]} : vector<64x128xf32> to vector<8x128xf32>
    %cst_47 = arith.constant dense<0.000000e+00> : vector<8x128xf32>
    %115 = tpu.matmul %112, %97, %cst_47 {dimension_numbers = #tpu.dot_dimension_numbers<[1], [0], [0], [1], [0, 0, 1, 1], [], []>} : vector<8x128xf32>, vector<128x128xf32>, vector<8x128xf32> -> vector<8x128xf32>
    %116 = arith.addf %114, %115 : vector<8x128xf32>
    %117 = math.tanh %116 : vector<8x128xf32>
    %c24_48 = arith.constant 24 : index
    %c0_49 = arith.constant 0 : index
    %118 = vector.load %arg14[%c24_48, %c0_49] : memref<64x128xf32, #tpu.memory_space<vmem>>, vector<8x128xf32>
    tpu.vector_store %arg14[%c24_48, %c0_49], %117 {strides = array<i32>} : memref<64x128xf32, #tpu.memory_space<vmem>>, vector<8x128xf32>,
    %119 = vector.extract_strided_slice %96 {offsets = [32, 0], sizes = [8, 128], strides = [1, 1]} : vector<64x128xf32> to vector<8x128xf32>
    %cst_50 = arith.constant dense<0.000000e+00> : vector<8x128xf32>
    %120 = tpu.matmul %117, %97, %cst_50 {dimension_numbers = #tpu.dot_dimension_numbers<[1], [0], [0], [1], [0, 0, 1, 1], [], []>} : vector<8x128xf32>, vector<128x128xf32>, vector<8x128xf32> -> vector<8x128xf32>
    %121 = arith.addf %119, %120 : vector<8x128xf32>
    %122 = math.tanh %121 : vector<8x128xf32>
    %c32_51 = arith.constant 32 : index
    %c0_52 = arith.constant 0 : index
    %123 = vector.load %arg14[%c32_51, %c0_52] : memref<64x128xf32, #tpu.memory_space<vmem>>, vector<8x128xf32>
    tpu.vector_store %arg14[%c32_51, %c0_52], %122 {strides = array<i32>} : memref<64x128xf32, #tpu.memory_space<vmem>>, vector<8x128xf32>,
    %124 = vector.extract_strided_slice %96 {offsets = [40, 0], sizes = [8, 128], strides = [1, 1]} : vector<64x128xf32> to vector<8x128xf32>
    %cst_53 = arith.constant dense<0.000000e+00> : vector<8x128xf32>
    %125 = tpu.matmul %122, %97, %cst_53 {dimension_numbers = #tpu.dot_dimension_numbers<[1], [0], [0], [1], [0, 0, 1, 1], [], []>} : vector<8x128xf32>, vector<128x128xf32>, vector<8x128xf32> -> vector<8x128xf32>
    %126 = arith.addf %124, %125 : vector<8x128xf32>
    %127 = math.tanh %126 : vector<8x128xf32>
    %c40_54 = arith.constant 40 : index
    %c0_55 = arith.constant 0 : index
    %128 = vector.load %arg14[%c40_54, %c0_55] : memref<64x128xf32, #tpu.memory_space<vmem>>, vector<8x128xf32>
    tpu.vector_store %arg14[%c40_54, %c0_55], %127 {strides = array<i32>} : memref<64x128xf32, #tpu.memory_space<vmem>>, vector<8x128xf32>,
    %129 = vector.extract_strided_slice %96 {offsets = [48, 0], sizes = [8, 128], strides = [1, 1]} : vector<64x128xf32> to vector<8x128xf32>
    %cst_56 = arith.constant dense<0.000000e+00> : vector<8x128xf32>
    %130 = tpu.matmul %127, %97, %cst_56 {dimension_numbers = #tpu.dot_dimension_numbers<[1], [0], [0], [1], [0, 0, 1, 1], [], []>} : vector<8x128xf32>, vector<128x128xf32>, vector<8x128xf32> -> vector<8x128xf32>
    %131 = arith.addf %129, %130 : vector<8x128xf32>
    %132 = math.tanh %131 : vector<8x128xf32>
    %c48_57 = arith.constant 48 : index
    %c0_58 = arith.constant 0 : index
    %133 = vector.load %arg14[%c48_57, %c0_58] : memref<64x128xf32, #tpu.memory_space<vmem>>, vector<8x128xf32>
    tpu.vector_store %arg14[%c48_57, %c0_58], %132 {strides = array<i32>} : memref<64x128xf32, #tpu.memory_space<vmem>>, vector<8x128xf32>,
    %134 = vector.extract_strided_slice %96 {offsets = [56, 0], sizes = [8, 128], strides = [1, 1]} : vector<64x128xf32> to vector<8x128xf32>
    %cst_59 = arith.constant dense<0.000000e+00> : vector<8x128xf32>
    %135 = tpu.matmul %132, %97, %cst_59 {dimension_numbers = #tpu.dot_dimension_numbers<[1], [0], [0], [1], [0, 0, 1, 1], [], []>} : vector<8x128xf32>, vector<128x128xf32>, vector<8x128xf32> -> vector<8x128xf32>
    %136 = arith.addf %134, %135 : vector<8x128xf32>
    %137 = math.tanh %136 : vector<8x128xf32>
    %c56_60 = arith.constant 56 : index
    %c0_61 = arith.constant 0 : index
    %138 = vector.load %arg14[%c56_60, %c0_61] : memref<64x128xf32, #tpu.memory_space<vmem>>, vector<8x128xf32>
    tpu.vector_store %arg14[%c56_60, %c0_61], %137 {strides = array<i32>} : memref<64x128xf32, #tpu.memory_space<vmem>>, vector<8x128xf32>,
    %c0_62 = arith.constant 0 : index
    %c0_63 = arith.constant 0 : index
    %139 = vector.load %arg14[%c0_62, %c0_63] : memref<64x128xf32, #tpu.memory_space<vmem>>, vector<64x128xf32>
    %140 = vector.extract_strided_slice %139 {offsets = [56, 0], sizes = [8, 128], strides = [1, 1]} : vector<64x128xf32> to vector<8x128xf32>
    %141 = vector.extract_strided_slice %139 {offsets = [48, 0], sizes = [8, 128], strides = [1, 1]} : vector<64x128xf32> to vector<8x128xf32>
    %142 = vector.extract_strided_slice %139 {offsets = [40, 0], sizes = [8, 128], strides = [1, 1]} : vector<64x128xf32> to vector<8x128xf32>
    %143 = vector.extract_strided_slice %139 {offsets = [32, 0], sizes = [8, 128], strides = [1, 1]} : vector<64x128xf32> to vector<8x128xf32>
    %144 = vector.extract_strided_slice %139 {offsets = [24, 0], sizes = [8, 128], strides = [1, 1]} : vector<64x128xf32> to vector<8x128xf32>
    %145 = vector.extract_strided_slice %139 {offsets = [16, 0], sizes = [8, 128], strides = [1, 1]} : vector<64x128xf32> to vector<8x128xf32>
    %146 = vector.extract_strided_slice %139 {offsets = [8, 0], sizes = [8, 128], strides = [1, 1]} : vector<64x128xf32> to vector<8x128xf32>
    %147 = vector.extract_strided_slice %139 {offsets = [0, 0], sizes = [8, 128], strides = [1, 1]} : vector<64x128xf32> to vector<8x128xf32>
    %148 = tpu.concatenate %140, %141, %142, %143, %144, %145, %146, %147 in 0 : vector<8x128xf32>, vector<8x128xf32>, vector<8x128xf32>, vector<8x128xf32>, vector<8x128xf32>, vector<8x128xf32>, vector<8x128xf32>, vector<8x128xf32> -> vector<64x128xf32>
    %149 = arith.select %13, %148, %139 : vector<64x128xi1>, vector<64x128xf32>
    %c0_64 = arith.constant 0 : index
    %c0_65 = arith.constant 0 : index
    %150 = vector.load %arg8[%c0_64, %c0_65] : memref<128x128xf32, #tpu.memory_space<vmem>>, vector<128x128xf32>
    %cst_66 = arith.constant dense<0.000000e+00> : vector<64x128xf32>
    %151 = tpu.matmul %149, %150, %cst_66 {dimension_numbers = #tpu.dot_dimension_numbers<[1], [0], [0], [1], [0, 0, 1, 1], [], []>} : vector<64x128xf32>, vector<128x128xf32>, vector<64x128xf32> -> vector<64x128xf32>
    %c0_67 = arith.constant 0 : index
    %c0_68 = arith.constant 0 : index
    %152 = vector.load %arg9[%c0_67, %c0_68] : memref<16x128xf32, #tpu.memory_space<vmem>>, vector<16x128xf32>
    %cst_69 = arith.constant dense<0.000000e+00> : vector<64x128xf32>
    %153 = tpu.matmul %7, %152, %cst_69 {dimension_numbers = #tpu.dot_dimension_numbers<[1], [0], [0], [1], [0, 0, 1, 1], [], []>} : vector<64x16xf32>, vector<16x128xf32>, vector<64x128xf32> -> vector<64x128xf32>
    %154 = arith.addf %151, %153 : vector<64x128xf32>
    %c0_70 = arith.constant 0 : index
    %c0_71 = arith.constant 0 : index
    %155 = vector.load %arg10[%c0_70, %c0_71] : memref<1x128xf32, #tpu.memory_space<vmem>>, vector<1x128xf32>
    %156 = vector.broadcast %155 : vector<1x128xf32> to vector<64x128xf32>
    %157 = arith.addf %154, %156 : vector<64x128xf32>
    %158 = math.tanh %157 : vector<64x128xf32>
    %159 = vector.extract_strided_slice %158 {offsets = [0, 0], sizes = [8, 128], strides = [1, 1]} : vector<64x128xf32> to vector<8x128xf32>
    %160 = vector.extract_strided_slice %158 {offsets = [8, 0], sizes = [8, 128], strides = [1, 1]} : vector<64x128xf32> to vector<8x128xf32>
    %161 = arith.maximumf %159, %160 : vector<8x128xf32>
    %162 = vector.extract_strided_slice %158 {offsets = [16, 0], sizes = [8, 128], strides = [1, 1]} : vector<64x128xf32> to vector<8x128xf32>
    %163 = arith.maximumf %161, %162 : vector<8x128xf32>
    %164 = vector.extract_strided_slice %158 {offsets = [24, 0], sizes = [8, 128], strides = [1, 1]} : vector<64x128xf32> to vector<8x128xf32>
    %165 = arith.maximumf %163, %164 : vector<8x128xf32>
    %166 = vector.extract_strided_slice %158 {offsets = [32, 0], sizes = [8, 128], strides = [1, 1]} : vector<64x128xf32> to vector<8x128xf32>
    %167 = arith.maximumf %165, %166 : vector<8x128xf32>
    %168 = vector.extract_strided_slice %158 {offsets = [40, 0], sizes = [8, 128], strides = [1, 1]} : vector<64x128xf32> to vector<8x128xf32>
    %169 = arith.maximumf %167, %168 : vector<8x128xf32>
    %170 = vector.extract_strided_slice %158 {offsets = [48, 0], sizes = [8, 128], strides = [1, 1]} : vector<64x128xf32> to vector<8x128xf32>
    %171 = arith.maximumf %169, %170 : vector<8x128xf32>
    %172 = vector.extract_strided_slice %158 {offsets = [56, 0], sizes = [8, 128], strides = [1, 1]} : vector<64x128xf32> to vector<8x128xf32>
    %173 = arith.maximumf %171, %172 : vector<8x128xf32>
    %c0_72 = arith.constant 0 : index
    %c0_73 = arith.constant 0 : index
    %174 = vector.load %arg11[%c0_72, %c0_73] : memref<128x128xf32, #tpu.memory_space<vmem>>, vector<128x128xf32>
    %cst_74 = arith.constant dense<0.000000e+00> : vector<8x128xf32>
    %175 = tpu.matmul %173, %174, %cst_74 {dimension_numbers = #tpu.dot_dimension_numbers<[1], [0], [0], [1], [0, 0, 1, 1], [], []>} : vector<8x128xf32>, vector<128x128xf32>, vector<8x128xf32> -> vector<8x128xf32>
    %c0_75 = arith.constant 0 : index
    %c0_76 = arith.constant 0 : index
    %176 = vector.load %arg12[%c0_75, %c0_76] : memref<1x128xf32, #tpu.memory_space<vmem>>, vector<1x128xf32>
    %177 = vector.broadcast %176 : vector<1x128xf32> to vector<8x128xf32>
    %178 = arith.addf %175, %177 : vector<8x128xf32>
    %c0_77 = arith.constant 0 : index
    %c0_78 = arith.constant 0 : index
    %179 = vector.load %arg13[%c0_77, %c0_78] : memref<8x128xf32, #tpu.memory_space<vmem>>, vector<8x128xf32>
    tpu.vector_store %arg13[%c0_77, %c0_78], %178 {strides = array<i32>} : memref<8x128xf32, #tpu.memory_space<vmem>>, vector<8x128xf32>,
    return
  }
}

</mosaic_0001>

<llo_original>
// kernel: text_rnn_forward.1
$region0: #{text_rnn_forward.1}
  #allocation0 [shape = 'u32[]', space=smem, size = 0x4, offset = 0x4, fixed_abs, tag = 'smem constant byte address 0x4 - core index']
  #allocation1 [shape = 'u32[72,128]{1,0:T(1,128)}', space=vmem, size = 0x9000, scoped, tag = 'internal scratch']
  #allocation2 [shape = 'f32[64,128]{1,0:T(8,128)}', space=vmem, size = 0x8000, scoped, tag = 'scratch operand']
  %s0 = inlined_call_operand.vmem [shape: s32[64,1], index: 0, kind: input, shape index: {}]
  %s1 = inlined_call_operand.hbm [shape: f32[128,16], index: 1, kind: input, shape index: {}]
  %s2 = inlined_call_operand.vmem [shape: f32[16,128], index: 2, kind: input, shape index: {}]
  %s3 = inlined_call_operand.vmem [shape: f32[1,128], index: 3, kind: input, shape index: {}]
  %s4 = inlined_call_operand.hbm [shape: f32[128,128], index: 4, kind: input, shape index: {}]
  %s5 = inlined_call_operand.hbm [shape: f32[128,128], index: 5, kind: input, shape index: {}]
  %s6 = inlined_call_operand.vmem [shape: f32[1,128], index: 6, kind: input, shape index: {}]
  %s7 = inlined_call_operand.hbm [shape: f32[128,128], index: 7, kind: input, shape index: {}]
  %s8 = inlined_call_operand.hbm [shape: f32[128,128], index: 8, kind: input, shape index: {}]
  %s9 = inlined_call_operand.vmem [shape: f32[16,128], index: 9, kind: input, shape index: {}]
  %s10 = inlined_call_operand.vmem [shape: f32[1,128], index: 10, kind: input, shape index: {}]
  %s11 = inlined_call_operand.hbm [shape: f32[128,128], index: 11, kind: input, shape index: {}]
  %s12 = inlined_call_operand.vmem [shape: f32[1,128], index: 12, kind: input, shape index: {}]
  %s13 = inlined_call_operand.vmem [shape: f32[8,128], index: 13, kind: output, shape index: {}]
  %s14 = sld [smem:[#allocation0]]
  $region86: #{text_rnn_forward.1} parent=0
    _
  %s16 = ssub.s32 1, %s14
  %s17 = scalar_select 0, %s16, %s14
  $region1: #{text_rnn_forward.1} parent=0
    #allocation3 [shape = 'u8[65536]{0}', space=vmem, size = 0x10000, scoped, tag = 'input window, operand 1, single buffered']
    #allocation4 [shape = 's32[1]{0}', space=sflag, size = 0x4, scoped, tag = 'scoped memory for text_rnn_forward.1']
    #allocation5 [shape = 'u8[65536]{0}', space=vmem, size = 0x10000, scoped, tag = 'input window, operand 4, single buffered']
    #allocation6 [shape = 's32[1]{0}', space=sflag, size = 0x4, scoped, tag = 'scoped memory for text_rnn_forward.1']
    #allocation7 [shape = 'u8[65536]{0}', space=vmem, size = 0x10000, scoped, tag = 'input window, operand 5, single buffered']
    #allocation8 [shape = 'u8[65536]{0}', space=vmem, size = 0x10000, scoped, tag = 'input window, operand 7, single buffered']
    #allocation9 [shape = 's32[1]{0}', space=sflag, size = 0x4, scoped, tag = 'scoped memory for text_rnn_forward.1']
    #allocation10 [shape = 'u8[65536]{0}', space=vmem, size = 0x10000, scoped, tag = 'input window, operand 8, single buffered']
    #allocation11 [shape = 'u8[65536]{0}', space=vmem, size = 0x10000, scoped, tag = 'input window, operand 11, single buffered']
    #allocation12 [shape = 's32[1]{0}', space=sflag, size = 0x4, scoped, tag = 'scoped memory for text_rnn_forward.1']
    %18 = vsyncpa [#allocation4], 0
    %19 = vsyncpa [#allocation6], 0
    %20 = vsyncpa [#allocation9], 0
    %21 = vsyncpa [#allocation12], 0
    // Predicated region
    $region2: #{text_rnn_forward.1} parent=1 // pred_check
      _
    $region3: #{text_rnn_forward.1} parent=1 // pred_check_branch
      %23 = sbr.rel (0) target = $region5
    $region4: #{text_rnn_forward.1} parent=1 // pred_region
      _
    $region5: #{text_rnn_forward.1} parent=1 // pred_fallthru
      _
    // Predicated region
    $region6: #{text_rnn_forward.1} parent=1 // pred_check
      _
    $region7: #{text_rnn_forward.1} parent=1 // pred_check_branch
      %25 = sbr.rel (0) target = $region9
    $region8: #{text_rnn_forward.1} parent=1 // pred_region
      %27 = vsyncadd [#allocation4], 0
      %s28 = sshll.u32 %s1, 4
      %s29 = int_to_ptr.hbm [resolvable:$true] %s28
      %s30 = sshll.u32 [#allocation3], 4
      %s31 = int_to_ptr.vmem [resolvable:$true] %s30
      %36 = dma.hbm_to_vmem [thread:$0]  %s29, 2048, %s31, [#allocation4], 128, 128, 8
    $region9: #{text_rnn_forward.1} parent=1 // pred_fallthru
      _
    // Predicated region
    $region10: #{text_rnn_forward.1} parent=1 // pred_check
      _
    $region11: #{text_rnn_forward.1} parent=1 // pred_check_branch
      %38 = sbr.rel (0) target = $region13
    $region12: #{text_rnn_forward.1} parent=1 // pred_region
      _
    $region13: #{text_rnn_forward.1} parent=1 // pred_fallthru
      _
    // Predicated region
    $region14: #{text_rnn_forward.1} parent=1 // pred_check
      _
    $region15: #{text_rnn_forward.1} parent=1 // pred_check_branch
      %40 = sbr.rel (0) target = $region17
    $region16: #{text_rnn_forward.1} parent=1 // pred_region
      _
    $region17: #{text_rnn_forward.1} parent=1 // pred_fallthru
      _
    // Predicated region
    $region18: #{text_rnn_forward.1} parent=1 // pred_check
      _
    $region19: #{text_rnn_forward.1} parent=1 // pred_check_branch
      %42 = sbr.rel (0) target = $region21
    $region20: #{text_rnn_forward.1} parent=1 // pred_region
      %44 = vsyncadd [#allocation6], 0
      %s45 = sshll.u32 %s4, 4
      %s46 = int_to_ptr.hbm [resolvable:$true] %s45
      %s47 = sshll.u32 [#allocation5], 4
      %s48 = int_to_ptr.vmem [resolvable:$true] %s47
      %53 = dma.hbm_to_vmem [thread:$0]  %s46, 2048, %s48, [#allocation6], 128, 128, 8
    $region21: #{text_rnn_forward.1} parent=1 // pred_fallthru
      _
    // Predicated region
    $region22: #{text_rnn_forward.1} parent=1 // pred_check
      _
    $region23: #{text_rnn_forward.1} parent=1 // pred_check_branch
      %55 = sbr.rel (0) target = $region25
    $region24: #{text_rnn_forward.1} parent=1 // pred_region
      %57 = vsyncadd [#allocation6], 0
      %s58 = sshll.u32 %s5, 4
      %s59 = int_to_ptr.hbm [resolvable:$true] %s58
      %s60 = sshll.u32 [#allocation7], 4
      %s61 = int_to_ptr.vmem [resolvable:$true] %s60
      %66 = dma.hbm_to_vmem [thread:$0]  %s59, 2048, %s61, [#allocation6], 128, 128, 8
    $region25: #{text_rnn_forward.1} parent=1 // pred_fallthru
      _
    // Predicated region
    $region26: #{text_rnn_forward.1} parent=1 // pred_check
      _
    $region27: #{text_rnn_forward.1} parent=1 // pred_check_branch
      %68 = sbr.rel (0) target = $region29
    $region28: #{text_rnn_forward.1} parent=1 // pred_region
      _
    $region29: #{text_rnn_forward.1} parent=1 // pred_fallthru
      _
    // Predicated region
    $region30: #{text_rnn_forward.1} parent=1 // pred_check
      _
    $region31: #{text_rnn_forward.1} parent=1 // pred_check_branch
      %70 = sbr.rel (0) target = $region33
    $region32: #{text_rnn_forward.1} parent=1 // pred_region
      %72 = vsyncadd [#allocation9], 0
      %s73 = sshll.u32 %s7, 4
      %s74 = int_to_ptr.hbm [resolvable:$true] %s73
      %s75 = sshll.u32 [#allocation8], 4
      %s76 = int_to_ptr.vmem [resolvable:$true] %s75
      %81 = dma.hbm_to_vmem [thread:$0]  %s74, 2048, %s76, [#allocation9], 128, 128, 8
    $region33: #{text_rnn_forward.1} parent=1 // pred_fallthru
      _
    // Predicated region
    $region34: #{text_rnn_forward.1} parent=1 // pred_check
      _
    $region35: #{text_rnn_forward.1} parent=1 // pred_check_branch
      %83 = sbr.rel (0) target = $region37
    $region36: #{text_rnn_forward.1} parent=1 // pred_region
      %85 = vsyncadd [#allocation9], 0
      %s86 = sshll.u32 %s8, 4
      %s87 = int_to_ptr.hbm [resolvable:$true] %s86
      %s88 = sshll.u32 [#allocation10], 4
      %s89 = int_to_ptr.vmem [resolvable:$true] %s88
      %94 = dma.hbm_to_vmem [thread:$0]  %s87, 2048, %s89, [#allocation9], 128, 128, 8
    $region37: #{text_rnn_forward.1} parent=1 // pred_fallthru
      _
    // Predicated region
    $region38: #{text_rnn_forward.1} parent=1 // pred_check
      _
    $region39: #{text_rnn_forward.1} parent=1 // pred_check_branch
      %96 = sbr.rel (0) target = $region41
    $region40: #{text_rnn_forward.1} parent=1 // pred_region
      _
    $region41: #{text_rnn_forward.1} parent=1 // pred_fallthru
      _
    // Predicated region
    $region42: #{text_rnn_forward.1} parent=1 // pred_check
      _
    $region43: #{text_rnn_forward.1} parent=1 // pred_check_branch
      %98 = sbr.rel (0) target = $region45
    $region44: #{text_rnn_forward.1} parent=1 // pred_region
      _
    $region45: #{text_rnn_forward.1} parent=1 // pred_fallthru
      _
    // Predicated region
    $region46: #{text_rnn_forward.1} parent=1 // pred_check
      _
    $region47: #{text_rnn_forward.1} parent=1 // pred_check_branch
      %100 = sbr.rel (0) target = $region49
    $region48: #{text_rnn_forward.1} parent=1 // pred_region
      %102 = vsyncadd [#allocation12], 0
      %s103 = sshll.u32 %s11, 4
      %s104 = int_to_ptr.hbm [resolvable:$true] %s103
      %s105 = sshll.u32 [#allocation11], 4
      %s106 = int_to_ptr.vmem [resolvable:$true] %s105
      %111 = dma.hbm_to_vmem [thread:$0]  %s104, 2048, %s106, [#allocation12], 128, 128, 8
    $region49: #{text_rnn_forward.1} parent=1 // pred_fallthru
      _
    // Predicated region
    $region50: #{text_rnn_forward.1} parent=1 // pred_check
      _
    $region51: #{text_rnn_forward.1} parent=1 // pred_check_branch
      %113 = sbr.rel (0) target = $region53
    $region52: #{text_rnn_forward.1} parent=1 // pred_region
      _
    $region53: #{text_rnn_forward.1} parent=1 // pred_fallthru
      _
    // Predicated region
    $region54: #{text_rnn_forward.1} parent=1 // pred_check
      _
    $region55: #{text_rnn_forward.1} parent=1 // pred_check_branch
      %115 = sbr.rel (0) target = $region57
    $region56: #{text_rnn_forward.1} parent=1 // pred_region
      %117 = dma.done [#allocation4], 2048
    $region57: #{text_rnn_forward.1} parent=1 // pred_fallthru
      _
    // Predicated region
    $region58: #{text_rnn_forward.1} parent=1 // pred_check
      _
    $region59: #{text_rnn_forward.1} parent=1 // pred_check_branch
      %119 = sbr.rel (0) target = $region61
    $region60: #{text_rnn_forward.1} parent=1 // pred_region
      %121 = dma.done [#allocation6], 2048
    $region61: #{text_rnn_forward.1} parent=1 // pred_fallthru
      _
    // Predicated region
    $region62: #{text_rnn_forward.1} parent=1 // pred_check
      _
    $region63: #{text_rnn_forward.1} parent=1 // pred_check_branch
      %123 = sbr.rel (0) target = $region65
    $region64: #{text_rnn_forward.1} parent=1 // pred_region
      %125 = dma.done [#allocation6], 2048
    $region65: #{text_rnn_forward.1} parent=1 // pred_fallthru
      _
    // Predicated region
    $region66: #{text_rnn_forward.1} parent=1 // pred_check
      _
    $region67: #{text_rnn_forward.1} parent=1 // pred_check_branch
      %127 = sbr.rel (0) target = $region69
    $region68: #{text_rnn_forward.1} parent=1 // pred_region
      %129 = dma.done [#allocation9], 2048
    $region69: #{text_rnn_forward.1} parent=1 // pred_fallthru
      _
    // Predicated region
    $region70: #{text_rnn_forward.1} parent=1 // pred_check
      _
    $region71: #{text_rnn_forward.1} parent=1 // pred_check_branch
      %131 = sbr.rel (0) target = $region73
    $region72: #{text_rnn_forward.1} parent=1 // pred_region
      %133 = dma.done [#allocation9], 2048
    $region73: #{text_rnn_forward.1} parent=1 // pred_fallthru
      _
    // Predicated region
    $region74: #{text_rnn_forward.1} parent=1 // pred_check
      _
    $region75: #{text_rnn_forward.1} parent=1 // pred_check_branch
      %135 = sbr.rel (0) target = $region77
    $region76: #{text_rnn_forward.1} parent=1 // pred_region
      %137 = dma.done [#allocation12], 2048
    $region77: #{text_rnn_forward.1} parent=1 // pred_fallthru
      _
    %v138 = vld [vmem:[%s0] sm:$0xff]
    %v139 = vld [vmem:[%s0 + $0x8] sm:$0xff]
    %v140 = vld [vmem:[%s0 + $0x10] sm:$0xff]
    %v141 = vld [vmem:[%s0 + $0x18] sm:$0xff]
    %v142 = vld [vmem:[%s0 + $0x20] sm:$0xff]
    %v143 = vld [vmem:[%s0 + $0x28] sm:$0xff]
    %v144 = vld [vmem:[%s0 + $0x30] sm:$0xff]
    %v145 = vld [vmem:[%s0 + $0x38] sm:$0xff]
    %v146 = vlaneseq
    %v147 = vand.u32 %v146, 127
    %148 = vset.pattern.permute.xlu0 0
    %149 = vperm.xlu0 %148, %v138
    %v150 = vpop.permute.xlu0 %149
    %151 = vset.pattern.permute.xlu0 0
    %152 = vperm.xlu0 %151, %v139
    %v153 = vpop.permute.xlu0 %152
    %154 = vset.pattern.permute.xlu0 0
    %155 = vperm.xlu0 %154, %v140
    %v156 = vpop.permute.xlu0 %155
    %157 = vset.pattern.permute.xlu0 0
    %158 = vperm.xlu0 %157, %v141
    %v159 = vpop.permute.xlu0 %158
    %160 = vset.pattern.permute.xlu0 0
    %161 = vperm.xlu0 %160, %v142
    %v162 = vpop.permute.xlu0 %161
    %163 = vset.pattern.permute.xlu0 0
    %164 = vperm.xlu0 %163, %v143
    %v165 = vpop.permute.xlu0 %164
    %166 = vset.pattern.permute.xlu0 0
    %167 = vperm.xlu0 %166, %v144
    %v168 = vpop.permute.xlu0 %167
    %169 = vset.pattern.permute.xlu0 0
    %170 = vperm.xlu0 %169, %v145
    %v171 = vpop.permute.xlu0 %170
    %vm172 = vcmp.eq.s32.totalorder %v147, %v150
    %vm173 = vcmp.eq.s32.totalorder %v147, %v153
    %vm174 = vcmp.eq.s32.totalorder %v147, %v156
    %vm175 = vcmp.eq.s32.totalorder %v147, %v159
    %vm176 = vcmp.eq.s32.totalorder %v147, %v162
    %vm177 = vcmp.eq.s32.totalorder %v147, %v165
    %vm178 = vcmp.eq.s32.totalorder %v147, %v168
    %vm179 = vcmp.eq.s32.totalorder %v147, %v171
    %v180 = vsel %vm172, 1, 0
    %v181 = vsel %vm173, 1, 0
    %v182 = vsel %vm174, 1, 0
    %v183 = vsel %vm175, 1, 0
    %v184 = vsel %vm176, 1, 0
    %v185 = vsel %vm177, 1, 0
    %v186 = vsel %vm178, 1, 0
    %v187 = vsel %vm179, 1, 0
    %v188 = vcvt.s32.f32 %v180
    %v189 = vcvt.s32.f32 %v181
    %v190 = vcvt.s32.f32 %v182
    %v191 = vcvt.s32.f32 %v183
    %v192 = vcvt.s32.f32 %v184
    %v193 = vcvt.s32.f32 %v185
    %v194 = vcvt.s32.f32 %v186
    %v195 = vcvt.s32.f32 %v187
    %v196 = vld [vmem:[#allocation3] sm:$0xff]
    %v197 = vld [vmem:[#allocation3 + $0x8] sm:$0xff]
    %v198 = vld [vmem:[#allocation3 + $0x10] sm:$0xff]
    %v199 = vld [vmem:[#allocation3 + $0x18] sm:$0xff]
    %v200 = vld [vmem:[#allocation3 + $0x20] sm:$0xff]
    %v201 = vld [vmem:[#allocation3 + $0x28] sm:$0xff]
    %v202 = vld [vmem:[#allocation3 + $0x30] sm:$0xff]
    %v203 = vld [vmem:[#allocation3 + $0x38] sm:$0xff]
    %v204 = vld [vmem:[#allocation3 + $0x40] sm:$0xff]
    %v205 = vld [vmem:[#allocation3 + $0x48] sm:$0xff]
    %v206 = vld [vmem:[#allocation3 + $0x50] sm:$0xff]
    %v207 = vld [vmem:[#allocation3 + $0x58] sm:$0xff]
    %v208 = vld [vmem:[#allocation3 + $0x60] sm:$0xff]
    %v209 = vld [vmem:[#allocation3 + $0x68] sm:$0xff]
    %v210 = vld [vmem:[#allocation3 + $0x70] sm:$0xff]
    %v211 = vld [vmem:[#allocation3 + $0x78] sm:$0xff]
    %212 = vmatpush.msra.mxu0 %v211
    %213 = vmatpush.msra.mxu0 %v210
    %214 = vmatpush.msra.mxu0 %v209
    %215 = vmatpush.msra.mxu0 %v208
    %216 = vmatpush.msra.mxu0 %v207
    %217 = vmatpush.msra.mxu0 %v206
    %218 = vmatpush.msra.mxu0 %v205
    %219 = vmatpush.msra.mxu0 %v204
    %220 = vmatpush.msra.mxu0 %v203
    %221 = vmatpush.msra.mxu0 %v202
    %222 = vmatpush.msra.mxu0 %v201
    %223 = vmatpush.msra.mxu0 %v200
    %224 = vmatpush.msra.mxu0 %v199
    %225 = vmatpush.msra.mxu0 %v198
    %226 = vmatpush.msra.mxu0 %v197
    %227 = vmatpush.msra.mxu0 %v196
    %228 = vmatmul.f32.gmra.mxu0 %v188
    %v229 = vpop.f32.mrf.mxu0
    %v230 = vadd.f32 0.0, %v229
    %231 = vmatmul.f32.gmra.mxu0 %v189
    %v232 = vpop.f32.mrf.mxu0
    %v233 = vadd.f32 0.0, %v232
    %234 = vmatmul.f32.gmra.mxu0 %v190
    %v235 = vpop.f32.mrf.mxu0
    %v236 = vadd.f32 0.0, %v235
    %237 = vmatmul.f32.gmra.mxu0 %v191
    %v238 = vpop.f32.mrf.mxu0
    %v239 = vadd.f32 0.0, %v238
    %240 = vmatmul.f32.gmra.mxu0 %v192
    %v241 = vpop.f32.mrf.mxu0
    %v242 = vadd.f32 0.0, %v241
    %243 = vmatmul.f32.gmra.mxu0 %v193
    %v244 = vpop.f32.mrf.mxu0
    %v245 = vadd.f32 0.0, %v244
    %246 = vmatmul.f32.gmra.mxu0 %v194
    %v247 = vpop.f32.mrf.mxu0
    %v248 = vadd.f32 0.0, %v247
    %249 = vmatmul.f32.gmra.mxu0 %v195
    %v250 = vpop.f32.mrf.mxu0
    %v251 = vadd.f32 0.0, %v250
    %252 = vdwg.mxu0
    %vm253 = vcmp.ge.s32.totalorder %v147, 32
    %vm254 = vcmp.lt.s32.totalorder %v147, 64
    %vm255 = vmand %vm253, %vm254
    %v256 = vld [vmem:[%s2] sm:$0xff]
    %v257 = vld [vmem:[%s2 + $0x8] sm:$0xff]
    %v258 = vld [vmem:[%s3] sm:$0x1]
    %v260 = vperm.slane %v258, 0
    %vm262 = vcmask 130048
    %v264 = vsel %vm262, %v230, 0
    %v267 = vsel %vm262, %v233, 0
    %v270 = vsel %vm262, %v236, 0
    %v273 = vsel %vm262, %v239, 0
    %v276 = vsel %vm262, %v242, 0
    %v279 = vsel %vm262, %v245, 0
    %v282 = vsel %vm262, %v248, 0
    %v285 = vsel %vm262, %v251, 0
    %287 = vmatpush.msra.mxu0 0.0
    %288 = vmatpush.msra.mxu0 0.0
    %289 = vmatpush.msra.mxu0 0.0
    %290 = vmatpush.msra.mxu0 0.0
    %291 = vmatpush.msra.mxu0 0.0
    %292 = vmatpush.msra.mxu0 0.0
    %293 = vmatpush.msra.mxu0 0.0
    %294 = vmatpush.msra.mxu0 0.0
    %295 = vmatpush.msra.mxu0 0.0
    %296 = vmatpush.msra.mxu0 0.0
    %297 = vmatpush.msra.mxu0 0.0
    %298 = vmatpush.msra.mxu0 0.0
    %299 = vmatpush.msra.mxu0 0.0
    %300 = vmatpush.msra.mxu0 0.0
    %301 = vmatpush.msra.mxu0 %v257
    %302 = vmatpush.msra.mxu0 %v256
    %303 = vmatmul.f32.gmra.mxu0 %v264
    %v304 = vpop.f32.mrf.mxu0
    %v305 = vadd.f32 %v260, %v304
    %306 = vmatmul.f32.gmra.mxu0 %v267
    %v307 = vpop.f32.mrf.mxu0
    %v308 = vadd.f32 %v260, %v307
    %309 = vmatmul.f32.gmra.mxu0 %v270
    %v310 = vpop.f32.mrf.mxu0
    %v311 = vadd.f32 %v260, %v310
    %312 = vmatmul.f32.gmra.mxu0 %v273
    %v313 = vpop.f32.mrf.mxu0
    %v314 = vadd.f32 %v260, %v313
    %315 = vmatmul.f32.gmra.mxu0 %v276
    %v316 = vpop.f32.mrf.mxu0
    %v317 = vadd.f32 %v260, %v316
    %318 = vmatmul.f32.gmra.mxu0 %v279
    %v319 = vpop.f32.mrf.mxu0
    %v320 = vadd.f32 %v260, %v319
    %321 = vmatmul.f32.gmra.mxu0 %v282
    %v322 = vpop.f32.mrf.mxu0
    %v323 = vadd.f32 %v260, %v322
    %324 = vmatmul.f32.gmra.mxu0 %v285
    %v325 = vpop.f32.mrf.mxu0
    %v326 = vadd.f32 %v260, %v325
    %327 = vdwg.mxu0
    %v328 = vsel %vm255, %v326, %v305
    %v329 = vsel %vm255, %v323, %v308
    %v330 = vsel %vm255, %v320, %v311
    %v331 = vsel %vm255, %v317, %v314
    %v332 = vsel %vm255, %v314, %v317
    %v333 = vsel %vm255, %v311, %v320
    %v334 = vsel %vm255, %v308, %v323
    %v335 = vsel %vm255, %v305, %v326
    %v336 = vld [vmem:[#allocation5] sm:$0xff]
    %v337 = vld [vmem:[#allocation5 + $0x8] sm:$0xff]
    %v338 = vld [vmem:[#allocation5 + $0x10] sm:$0xff]
    %v339 = vld [vmem:[#allocation5 + $0x18] sm:$0xff]
    %v340 = vld [vmem:[#allocation5 + $0x20] sm:$0xff]
    %v341 = vld [vmem:[#allocation5 + $0x28] sm:$0xff]
    %v342 = vld [vmem:[#allocation5 + $0x30] sm:$0xff]
    %v343 = vld [vmem:[#allocation5 + $0x38] sm:$0xff]
    %v344 = vld [vmem:[#allocation5 + $0x40] sm:$0xff]
    %v345 = vld [vmem:[#allocation5 + $0x48] sm:$0xff]
    %v346 = vld [vmem:[#allocation5 + $0x50] sm:$0xff]
    %v347 = vld [vmem:[#allocation5 + $0x58] sm:$0xff]
    %v348 = vld [vmem:[#allocation5 + $0x60] sm:$0xff]
    %v349 = vld [vmem:[#allocation5 + $0x68] sm:$0xff]
    %v350 = vld [vmem:[#allocation5 + $0x70] sm:$0xff]
    %v351 = vld [vmem:[#allocation5 + $0x78] sm:$0xff]
    %352 = vmatpush.msra.mxu0 %v351
    %353 = vmatpush.msra.mxu0 %v350
    %354 = vmatpush.msra.mxu0 %v349
    %355 = vmatpush.msra.mxu0 %v348
    %356 = vmatpush.msra.mxu0 %v347
    %357 = vmatpush.msra.mxu0 %v346
    %358 = vmatpush.msra.mxu0 %v345
    %359 = vmatpush.msra.mxu0 %v344
    %360 = vmatpush.msra.mxu0 %v343
    %361 = vmatpush.msra.mxu0 %v342
    %362 = vmatpush.msra.mxu0 %v341
    %363 = vmatpush.msra.mxu0 %v340
    %364 = vmatpush.msra.mxu0 %v339
    %365 = vmatpush.msra.mxu0 %v338
    %366 = vmatpush.msra.mxu0 %v337
    %367 = vmatpush.msra.mxu0 %v336
    %368 = vmatmul.f32.gmra.mxu0 0.0
    %v369 = vpop.f32.mrf.mxu0
    %v370 = vadd.f32 0.0, %v369
    %371 = vdwg.mxu0
    %v372 = vadd.f32 %v328, %v370
    %v373 = vtanh.pop %v372
    %374 = vst [vmem:[#allocation2] sm:$0xff] %v373
    %375 = vmatpush.msra.mxu0 %v351
    %376 = vmatpush.msra.mxu0 %v350
    %377 = vmatpush.msra.mxu0 %v349
    %378 = vmatpush.msra.mxu0 %v348
    %379 = vmatpush.msra.mxu0 %v347
    %380 = vmatpush.msra.mxu0 %v346
    %381 = vmatpush.msra.mxu0 %v345
    %382 = vmatpush.msra.mxu0 %v344
    %383 = vmatpush.msra.mxu0 %v343
    %384 = vmatpush.msra.mxu0 %v342
    %385 = vmatpush.msra.mxu0 %v341
    %386 = vmatpush.msra.mxu0 %v340
    %387 = vmatpush.msra.mxu0 %v339
    %388 = vmatpush.msra.mxu0 %v338
    %389 = vmatpush.msra.mxu0 %v337
    %390 = vmatpush.msra.mxu0 %v336
    %391 = vmatmul.f32.gmra.mxu0 %v373
    %v392 = vpop.f32.mrf.mxu0
    %v393 = vadd.f32 0.0, %v392
    %394 = vdwg.mxu0
    %v395 = vadd.f32 %v329, %v393
    %v396 = vtanh.pop %v395
    %397 = vst [vmem:[#allocation2 + $0x8] sm:$0xff] %v396
    %398 = vmatpush.msra.mxu0 %v351
    %399 = vmatpush.msra.mxu0 %v350
    %400 = vmatpush.msra.mxu0 %v349
    %401 = vmatpush.msra.mxu0 %v348
    %402 = vmatpush.msra.mxu0 %v347
    %403 = vmatpush.msra.mxu0 %v346
    %404 = vmatpush.msra.mxu0 %v345
    %405 = vmatpush.msra.mxu0 %v344
    %406 = vmatpush.msra.mxu0 %v343
    %407 = vmatpush.msra.mxu0 %v342
    %408 = vmatpush.msra.mxu0 %v341
    %409 = vmatpush.msra.mxu0 %v340
    %410 = vmatpush.msra.mxu0 %v339
    %411 = vmatpush.msra.mxu0 %v338
    %412 = vmatpush.msra.mxu0 %v337
    %413 = vmatpush.msra.mxu0 %v336
    %414 = vmatmul.f32.gmra.mxu0 %v396
    %v415 = vpop.f32.mrf.mxu0
    %v416 = vadd.f32 0.0, %v415
    %417 = vdwg.mxu0
    %v418 = vadd.f32 %v330, %v416
    %v419 = vtanh.pop %v418
    %420 = vst [vmem:[#allocation2 + $0x10] sm:$0xff] %v419
    %421 = vmatpush.msra.mxu0 %v351
    %422 = vmatpush.msra.mxu0 %v350
    %423 = vmatpush.msra.mxu0 %v349
    %424 = vmatpush.msra.mxu0 %v348
    %425 = vmatpush.msra.mxu0 %v347
    %426 = vmatpush.msra.mxu0 %v346
    %427 = vmatpush.msra.mxu0 %v345
    %428 = vmatpush.msra.mxu0 %v344
    %429 = vmatpush.msra.mxu0 %v343
    %430 = vmatpush.msra.mxu0 %v342
    %431 = vmatpush.msra.mxu0 %v341
    %432 = vmatpush.msra.mxu0 %v340
    %433 = vmatpush.msra.mxu0 %v339
    %434 = vmatpush.msra.mxu0 %v338
    %435 = vmatpush.msra.mxu0 %v337
    %436 = vmatpush.msra.mxu0 %v336
    %437 = vmatmul.f32.gmra.mxu0 %v419
    %v438 = vpop.f32.mrf.mxu0
    %v439 = vadd.f32 0.0, %v438
    %440 = vdwg.mxu0
    %v441 = vadd.f32 %v331, %v439
    %v442 = vtanh.pop %v441
    %443 = vst [vmem:[#allocation2 + $0x18] sm:$0xff] %v442
    %444 = vmatpush.msra.mxu0 %v351
    %445 = vmatpush.msra.mxu0 %v350
    %446 = vmatpush.msra.mxu0 %v349
    %447 = vmatpush.msra.mxu0 %v348
    %448 = vmatpush.msra.mxu0 %v347
    %449 = vmatpush.msra.mxu0 %v346
    %450 = vmatpush.msra.mxu0 %v345
    %451 = vmatpush.msra.mxu0 %v344
    %452 = vmatpush.msra.mxu0 %v343
    %453 = vmatpush.msra.mxu0 %v342
    %454 = vmatpush.msra.mxu0 %v341
    %455 = vmatpush.msra.mxu0 %v340
    %456 = vmatpush.msra.mxu0 %v339
    %457 = vmatpush.msra.mxu0 %v338
    %458 = vmatpush.msra.mxu0 %v337
    %459 = vmatpush.msra.mxu0 %v336
    %460 = vmatmul.f32.gmra.mxu0 %v442
    %v461 = vpop.f32.mrf.mxu0
    %v462 = vadd.f32 0.0, %v461
    %463 = vdwg.mxu0
    %v464 = vadd.f32 %v332, %v462
    %v465 = vtanh.pop %v464
    %466 = vst [vmem:[#allocation2 + $0x20] sm:$0xff] %v465
    %467 = vmatpush.msra.mxu0 %v351
    %468 = vmatpush.msra.mxu0 %v350
    %469 = vmatpush.msra.mxu0 %v349
    %470 = vmatpush.msra.mxu0 %v348
    %471 = vmatpush.msra.mxu0 %v347
    %472 = vmatpush.msra.mxu0 %v346
    %473 = vmatpush.msra.mxu0 %v345
    %474 = vmatpush.msra.mxu0 %v344
    %475 = vmatpush.msra.mxu0 %v343
    %476 = vmatpush.msra.mxu0 %v342
    %477 = vmatpush.msra.mxu0 %v341
    %478 = vmatpush.msra.mxu0 %v340
    %479 = vmatpush.msra.mxu0 %v339
    %480 = vmatpush.msra.mxu0 %v338
    %481 = vmatpush.msra.mxu0 %v337
    %482 = vmatpush.msra.mxu0 %v336
    %483 = vmatmul.f32.gmra.mxu0 %v465
    %v484 = vpop.f32.mrf.mxu0
    %v485 = vadd.f32 0.0, %v484
    %486 = vdwg.mxu0
    %v487 = vadd.f32 %v333, %v485
    %v488 = vtanh.pop %v487
    %489 = vst [vmem:[#allocation2 + $0x28] sm:$0xff] %v488
    %490 = vmatpush.msra.mxu0 %v351
    %491 = vmatpush.msra.mxu0 %v350
    %492 = vmatpush.msra.mxu0 %v349
    %493 = vmatpush.msra.mxu0 %v348
    %494 = vmatpush.msra.mxu0 %v347
    %495 = vmatpush.msra.mxu0 %v346
    %496 = vmatpush.msra.mxu0 %v345
    %497 = vmatpush.msra.mxu0 %v344
    %498 = vmatpush.msra.mxu0 %v343
    %499 = vmatpush.msra.mxu0 %v342
    %500 = vmatpush.msra.mxu0 %v341
    %501 = vmatpush.msra.mxu0 %v340
    %502 = vmatpush.msra.mxu0 %v339
    %503 = vmatpush.msra.mxu0 %v338
    %504 = vmatpush.msra.mxu0 %v337
    %505 = vmatpush.msra.mxu0 %v336
    %506 = vmatmul.f32.gmra.mxu0 %v488
    %v507 = vpop.f32.mrf.mxu0
    %v508 = vadd.f32 0.0, %v507
    %509 = vdwg.mxu0
    %v510 = vadd.f32 %v334, %v508
    %v511 = vtanh.pop %v510
    %512 = vst [vmem:[#allocation2 + $0x30] sm:$0xff] %v511
    %513 = vmatpush.msra.mxu0 %v351
    %514 = vmatpush.msra.mxu0 %v350
    %515 = vmatpush.msra.mxu0 %v349
    %516 = vmatpush.msra.mxu0 %v348
    %517 = vmatpush.msra.mxu0 %v347
    %518 = vmatpush.msra.mxu0 %v346
    %519 = vmatpush.msra.mxu0 %v345
    %520 = vmatpush.msra.mxu0 %v344
    %521 = vmatpush.msra.mxu0 %v343
    %522 = vmatpush.msra.mxu0 %v342
    %523 = vmatpush.msra.mxu0 %v341
    %524 = vmatpush.msra.mxu0 %v340
    %525 = vmatpush.msra.mxu0 %v339
    %526 = vmatpush.msra.mxu0 %v338
    %527 = vmatpush.msra.mxu0 %v337
    %528 = vmatpush.msra.mxu0 %v336
    %529 = vmatmul.f32.gmra.mxu0 %v511
    %v530 = vpop.f32.mrf.mxu0
    %v531 = vadd.f32 0.0, %v530
    %532 = vdwg.mxu0
    %v533 = vadd.f32 %v335, %v531
    %v534 = vtanh.pop %v533
    %535 = vst [vmem:[#allocation2 + $0x38] sm:$0xff] %v534
    %v536 = vld [vmem:[#allocation2] sm:$0xff]
    %v537 = vld [vmem:[#allocation2 + $0x8] sm:$0xff]
    %v538 = vld [vmem:[#allocation2 + $0x10] sm:$0xff]
    %v539 = vld [vmem:[#allocation2 + $0x18] sm:$0xff]
    %v540 = vld [vmem:[#allocation2 + $0x20] sm:$0xff]
    %v541 = vld [vmem:[#allocation2 + $0x28] sm:$0xff]
    %v542 = vld [vmem:[#allocation2 + $0x30] sm:$0xff]
    %v543 = vld [vmem:[#allocation2 + $0x38] sm:$0xff]
    %v544 = vsel %vm255, %v543, %v536
    %v545 = vsel %vm255, %v542, %v537
    %v546 = vsel %vm255, %v541, %v538
    %v547 = vsel %vm255, %v540, %v539
    %v548 = vsel %vm255, %v539, %v540
    %v549 = vsel %vm255, %v538, %v541
    %v550 = vsel %vm255, %v537, %v542
    %v551 = vsel %vm255, %v536, %v543
    %v552 = vld [vmem:[#allocation7] sm:$0xff]
    %v553 = vld [vmem:[#allocation7 + $0x8] sm:$0xff]
    %v554 = vld [vmem:[#allocation7 + $0x10] sm:$0xff]
    %v555 = vld [vmem:[#allocation7 + $0x18] sm:$0xff]
    %v556 = vld [vmem:[#allocation7 + $0x20] sm:$0xff]
    %v557 = vld [vmem:[#allocation7 + $0x28] sm:$0xff]
    %v558 = vld [vmem:[#allocation7 + $0x30] sm:$0xff]
    %v559 = vld [vmem:[#allocation7 + $0x38] sm:$0xff]
    %v560 = vld [vmem:[#allocation7 + $0x40] sm:$0xff]
    %v561 = vld [vmem:[#allocation7 + $0x48] sm:$0xff]
    %v562 = vld [vmem:[#allocation7 + $0x50] sm:$0xff]
    %v563 = vld [vmem:[#allocation7 + $0x58] sm:$0xff]
    %v564 = vld [vmem:[#allocation7 + $0x60] sm:$0xff]
    %v565 = vld [vmem:[#allocation7 + $0x68] sm:$0xff]
    %v566 = vld [vmem:[#allocation7 + $0x70] sm:$0xff]
    %v567 = vld [vmem:[#allocation7 + $0x78] sm:$0xff]
    %v568 = vld [vmem:[%s6] sm:$0x1]
    %v570 = vperm.slane %v568, 0
    %572 = vmatpush.msra.mxu0 %v567
    %573 = vmatpush.msra.mxu0 %v566
    %574 = vmatpush.msra.mxu0 %v565
    %575 = vmatpush.msra.mxu0 %v564
    %576 = vmatpush.msra.mxu0 %v563
    %577 = vmatpush.msra.mxu0 %v562
    %578 = vmatpush.msra.mxu0 %v561
    %579 = vmatpush.msra.mxu0 %v560
    %580 = vmatpush.msra.mxu0 %v559
    %581 = vmatpush.msra.mxu0 %v558
    %582 = vmatpush.msra.mxu0 %v557
    %583 = vmatpush.msra.mxu0 %v556
    %584 = vmatpush.msra.mxu0 %v555
    %585 = vmatpush.msra.mxu0 %v554
    %586 = vmatpush.msra.mxu0 %v553
    %587 = vmatpush.msra.mxu0 %v552
    %588 = vmatmul.f32.gmra.mxu0 %v544
    %v589 = vpop.f32.mrf.mxu0
    %v590 = vadd.f32 %v570, %v589
    %591 = vmatmul.f32.gmra.mxu0 %v545
    %v592 = vpop.f32.mrf.mxu0
    %v593 = vadd.f32 %v570, %v592
    %594 = vmatmul.f32.gmra.mxu0 %v546
    %v595 = vpop.f32.mrf.mxu0
    %v596 = vadd.f32 %v570, %v595
    %597 = vmatmul.f32.gmra.mxu0 %v547
    %v598 = vpop.f32.mrf.mxu0
    %v599 = vadd.f32 %v570, %v598
    %600 = vmatmul.f32.gmra.mxu0 %v548
    %v601 = vpop.f32.mrf.mxu0
    %v602 = vadd.f32 %v570, %v601
    %603 = vmatmul.f32.gmra.mxu0 %v549
    %v604 = vpop.f32.mrf.mxu0
    %v605 = vadd.f32 %v570, %v604
    %606 = vmatmul.f32.gmra.mxu0 %v550
    %v607 = vpop.f32.mrf.mxu0
    %v608 = vadd.f32 %v570, %v607
    %609 = vmatmul.f32.gmra.mxu0 %v551
    %v610 = vpop.f32.mrf.mxu0
    %v611 = vadd.f32 %v570, %v610
    %612 = vdwg.mxu0
    %v613 = vsel %vm255, %v611, %v590
    %v614 = vsel %vm255, %v608, %v593
    %v615 = vsel %vm255, %v605, %v596
    %v616 = vsel %vm255, %v602, %v599
    %v617 = vsel %vm255, %v599, %v602
    %v618 = vsel %vm255, %v596, %v605
    %v619 = vsel %vm255, %v593, %v608
    %v620 = vsel %vm255, %v590, %v611
    %v621 = vld [vmem:[#allocation8] sm:$0xff]
    %v622 = vld [vmem:[#allocation8 + $0x8] sm:$0xff]
    %v623 = vld [vmem:[#allocation8 + $0x10] sm:$0xff]
    %v624 = vld [vmem:[#allocation8 + $0x18] sm:$0xff]
    %v625 = vld [vmem:[#allocation8 + $0x20] sm:$0xff]
    %v626 = vld [vmem:[#allocation8 + $0x28] sm:$0xff]
    %v627 = vld [vmem:[#allocation8 + $0x30] sm:$0xff]
    %v628 = vld [vmem:[#allocation8 + $0x38] sm:$0xff]
    %v629 = vld [vmem:[#allocation8 + $0x40] sm:$0xff]
    %v630 = vld [vmem:[#allocation8 + $0x48] sm:$0xff]
    %v631 = vld [vmem:[#allocation8 + $0x50] sm:$0xff]
    %v632 = vld [vmem:[#allocation8 + $0x58] sm:$0xff]
    %v633 = vld [vmem:[#allocation8 + $0x60] sm:$0xff]
    %v634 = vld [vmem:[#allocation8 + $0x68] sm:$0xff]
    %v635 = vld [vmem:[#allocation8 + $0x70] sm:$0xff]
    %v636 = vld [vmem:[#allocation8 + $0x78] sm:$0xff]
    %637 = vmatpush.msra.mxu0 %v636
    %638 = vmatpush.msra.mxu0 %v635
    %639 = vmatpush.msra.mxu0 %v634
    %640 = vmatpush.msra.mxu0 %v633
    %641 = vmatpush.msra.mxu0 %v632
    %642 = vmatpush.msra.mxu0 %v631
    %643 = vmatpush.msra.mxu0 %v630
    %644 = vmatpush.msra.mxu0 %v629
    %645 = vmatpush.msra.mxu0 %v628
    %646 = vmatpush.msra.mxu0 %v627
    %647 = vmatpush.msra.mxu0 %v626
    %648 = vmatpush.msra.mxu0 %v625
    %649 = vmatpush.msra.mxu0 %v624
    %650 = vmatpush.msra.mxu0 %v623
    %651 = vmatpush.msra.mxu0 %v622
    %652 = vmatpush.msra.mxu0 %v621
    %653 = vmatmul.f32.gmra.mxu0 0.0
    %v654 = vpop.f32.mrf.mxu0
    %v655 = vadd.f32 0.0, %v654
    %656 = vdwg.mxu0
    %v657 = vadd.f32 %v613, %v655
    %v658 = vtanh.pop %v657
    %659 = vst [vmem:[#allocation2] sm:$0xff] %v658
    %660 = vmatpush.msra.mxu0 %v636
    %661 = vmatpush.msra.mxu0 %v635
    %662 = vmatpush.msra.mxu0 %v634
    %663 = vmatpush.msra.mxu0 %v633
    %664 = vmatpush.msra.mxu0 %v632
    %665 = vmatpush.msra.mxu0 %v631
    %666 = vmatpush.msra.mxu0 %v630
    %667 = vmatpush.msra.mxu0 %v629
    %668 = vmatpush.msra.mxu0 %v628
    %669 = vmatpush.msra.mxu0 %v627
    %670 = vmatpush.msra.mxu0 %v626
    %671 = vmatpush.msra.mxu0 %v625
    %672 = vmatpush.msra.mxu0 %v624
    %673 = vmatpush.msra.mxu0 %v623
    %674 = vmatpush.msra.mxu0 %v622
    %675 = vmatpush.msra.mxu0 %v621
    %676 = vmatmul.f32.gmra.mxu0 %v658
    %v677 = vpop.f32.mrf.mxu0
    %v678 = vadd.f32 0.0, %v677
    %679 = vdwg.mxu0
    %v680 = vadd.f32 %v614, %v678
    %v681 = vtanh.pop %v680
    %682 = vst [vmem:[#allocation2 + $0x8] sm:$0xff] %v681
    %683 = vmatpush.msra.mxu0 %v636
    %684 = vmatpush.msra.mxu0 %v635
    %685 = vmatpush.msra.mxu0 %v634
    %686 = vmatpush.msra.mxu0 %v633
    %687 = vmatpush.msra.mxu0 %v632
    %688 = vmatpush.msra.mxu0 %v631
    %689 = vmatpush.msra.mxu0 %v630
    %690 = vmatpush.msra.mxu0 %v629
    %691 = vmatpush.msra.mxu0 %v628
    %692 = vmatpush.msra.mxu0 %v627
    %693 = vmatpush.msra.mxu0 %v626
    %694 = vmatpush.msra.mxu0 %v625
    %695 = vmatpush.msra.mxu0 %v624
    %696 = vmatpush.msra.mxu0 %v623
    %697 = vmatpush.msra.mxu0 %v622
    %698 = vmatpush.msra.mxu0 %v621
    %699 = vmatmul.f32.gmra.mxu0 %v681
    %v700 = vpop.f32.mrf.mxu0
    %v701 = vadd.f32 0.0, %v700
    %702 = vdwg.mxu0
    %v703 = vadd.f32 %v615, %v701
    %v704 = vtanh.pop %v703
    %705 = vst [vmem:[#allocation2 + $0x10] sm:$0xff] %v704
    %706 = vmatpush.msra.mxu0 %v636
    %707 = vmatpush.msra.mxu0 %v635
    %708 = vmatpush.msra.mxu0 %v634
    %709 = vmatpush.msra.mxu0 %v633
    %710 = vmatpush.msra.mxu0 %v632
    %711 = vmatpush.msra.mxu0 %v631
    %712 = vmatpush.msra.mxu0 %v630
    %713 = vmatpush.msra.mxu0 %v629
    %714 = vmatpush.msra.mxu0 %v628
    %715 = vmatpush.msra.mxu0 %v627
    %716 = vmatpush.msra.mxu0 %v626
    %717 = vmatpush.msra.mxu0 %v625
    %718 = vmatpush.msra.mxu0 %v624
    %719 = vmatpush.msra.mxu0 %v623
    %720 = vmatpush.msra.mxu0 %v622
    %721 = vmatpush.msra.mxu0 %v621
    %722 = vmatmul.f32.gmra.mxu0 %v704
    %v723 = vpop.f32.mrf.mxu0
    %v724 = vadd.f32 0.0, %v723
    %725 = vdwg.mxu0
    %v726 = vadd.f32 %v616, %v724
    %v727 = vtanh.pop %v726
    %728 = vst [vmem:[#allocation2 + $0x18] sm:$0xff] %v727
    %729 = vmatpush.msra.mxu0 %v636
    %730 = vmatpush.msra.mxu0 %v635
    %731 = vmatpush.msra.mxu0 %v634
    %732 = vmatpush.msra.mxu0 %v633
    %733 = vmatpush.msra.mxu0 %v632
    %734 = vmatpush.msra.mxu0 %v631
    %735 = vmatpush.msra.mxu0 %v630
    %736 = vmatpush.msra.mxu0 %v629
    %737 = vmatpush.msra.mxu0 %v628
    %738 = vmatpush.msra.mxu0 %v627
    %739 = vmatpush.msra.mxu0 %v626
    %740 = vmatpush.msra.mxu0 %v625
    %741 = vmatpush.msra.mxu0 %v624
    %742 = vmatpush.msra.mxu0 %v623
    %743 = vmatpush.msra.mxu0 %v622
    %744 = vmatpush.msra.mxu0 %v621
    %745 = vmatmul.f32.gmra.mxu0 %v727
    %v746 = vpop.f32.mrf.mxu0
    %v747 = vadd.f32 0.0, %v746
    %748 = vdwg.mxu0
    %v749 = vadd.f32 %v617, %v747
    %v750 = vtanh.pop %v749
    %751 = vst [vmem:[#allocation2 + $0x20] sm:$0xff] %v750
    %752 = vmatpush.msra.mxu0 %v636
    %753 = vmatpush.msra.mxu0 %v635
    %754 = vmatpush.msra.mxu0 %v634
    %755 = vmatpush.msra.mxu0 %v633
    %756 = vmatpush.msra.mxu0 %v632
    %757 = vmatpush.msra.mxu0 %v631
    %758 = vmatpush.msra.mxu0 %v630
    %759 = vmatpush.msra.mxu0 %v629
    %760 = vmatpush.msra.mxu0 %v628
    %761 = vmatpush.msra.mxu0 %v627
    %762 = vmatpush.msra.mxu0 %v626
    %763 = vmatpush.msra.mxu0 %v625
    %764 = vmatpush.msra.mxu0 %v624
    %765 = vmatpush.msra.mxu0 %v623
    %766 = vmatpush.msra.mxu0 %v622
    %767 = vmatpush.msra.mxu0 %v621
    %768 = vmatmul.f32.gmra.mxu0 %v750
    %v769 = vpop.f32.mrf.mxu0
    %v770 = vadd.f32 0.0, %v769
    %771 = vdwg.mxu0
    %v772 = vadd.f32 %v618, %v770
    %v773 = vtanh.pop %v772
    %774 = vst [vmem:[#allocation2 + $0x28] sm:$0xff] %v773
    %775 = vmatpush.msra.mxu0 %v636
    %776 = vmatpush.msra.mxu0 %v635
    %777 = vmatpush.msra.mxu0 %v634
    %778 = vmatpush.msra.mxu0 %v633
    %779 = vmatpush.msra.mxu0 %v632
    %780 = vmatpush.msra.mxu0 %v631
    %781 = vmatpush.msra.mxu0 %v630
    %782 = vmatpush.msra.mxu0 %v629
    %783 = vmatpush.msra.mxu0 %v628
    %784 = vmatpush.msra.mxu0 %v627
    %785 = vmatpush.msra.mxu0 %v626
    %786 = vmatpush.msra.mxu0 %v625
    %787 = vmatpush.msra.mxu0 %v624
    %788 = vmatpush.msra.mxu0 %v623
    %789 = vmatpush.msra.mxu0 %v622
    %790 = vmatpush.msra.mxu0 %v621
    %791 = vmatmul.f32.gmra.mxu0 %v773
    %v792 = vpop.f32.mrf.mxu0
    %v793 = vadd.f32 0.0, %v792
    %794 = vdwg.mxu0
    %v795 = vadd.f32 %v619, %v793
    %v796 = vtanh.pop %v795
    %797 = vst [vmem:[#allocation2 + $0x30] sm:$0xff] %v796
    %798 = vmatpush.msra.mxu0 %v636
    %799 = vmatpush.msra.mxu0 %v635
    %800 = vmatpush.msra.mxu0 %v634
    %801 = vmatpush.msra.mxu0 %v633
    %802 = vmatpush.msra.mxu0 %v632
    %803 = vmatpush.msra.mxu0 %v631
    %804 = vmatpush.msra.mxu0 %v630
    %805 = vmatpush.msra.mxu0 %v629
    %806 = vmatpush.msra.mxu0 %v628
    %807 = vmatpush.msra.mxu0 %v627
    %808 = vmatpush.msra.mxu0 %v626
    %809 = vmatpush.msra.mxu0 %v625
    %810 = vmatpush.msra.mxu0 %v624
    %811 = vmatpush.msra.mxu0 %v623
    %812 = vmatpush.msra.mxu0 %v622
    %813 = vmatpush.msra.mxu0 %v621
    %814 = vmatmul.f32.gmra.mxu0 %v796
    %v815 = vpop.f32.mrf.mxu0
    %v816 = vadd.f32 0.0, %v815
    %817 = vdwg.mxu0
    %v818 = vadd.f32 %v620, %v816
    %v819 = vtanh.pop %v818
    %820 = vst [vmem:[#allocation2 + $0x38] sm:$0xff] %v819
    %v821 = vld [vmem:[#allocation2] sm:$0xff]
    %v822 = vld [vmem:[#allocation2 + $0x8] sm:$0xff]
    %v823 = vld [vmem:[#allocation2 + $0x10] sm:$0xff]
    %v824 = vld [vmem:[#allocation2 + $0x18] sm:$0xff]
    %v825 = vld [vmem:[#allocation2 + $0x20] sm:$0xff]
    %v826 = vld [vmem:[#allocation2 + $0x28] sm:$0xff]
    %v827 = vld [vmem:[#allocation2 + $0x30] sm:$0xff]
    %v828 = vld [vmem:[#allocation2 + $0x38] sm:$0xff]
    %v829 = vsel %vm255, %v828, %v821
    %v830 = vsel %vm255, %v827, %v822
    %v831 = vsel %vm255, %v826, %v823
    %v832 = vsel %vm255, %v825, %v824
    %v833 = vsel %vm255, %v824, %v825
    %v834 = vsel %vm255, %v823, %v826
    %v835 = vsel %vm255, %v822, %v827
    %v836 = vsel %vm255, %v821, %v828
    %v837 = vld [vmem:[#allocation10] sm:$0xff]
    %v838 = vld [vmem:[#allocation10 + $0x8] sm:$0xff]
    %v839 = vld [vmem:[#allocation10 + $0x10] sm:$0xff]
    %v840 = vld [vmem:[#allocation10 + $0x18] sm:$0xff]
    %v841 = vld [vmem:[#allocation10 + $0x20] sm:$0xff]
    %v842 = vld [vmem:[#allocation10 + $0x28] sm:$0xff]
    %v843 = vld [vmem:[#allocation10 + $0x30] sm:$0xff]
    %v844 = vld [vmem:[#allocation10 + $0x38] sm:$0xff]
    %v845 = vld [vmem:[#allocation10 + $0x40] sm:$0xff]
    %v846 = vld [vmem:[#allocation10 + $0x48] sm:$0xff]
    %v847 = vld [vmem:[#allocation10 + $0x50] sm:$0xff]
    %v848 = vld [vmem:[#allocation10 + $0x58] sm:$0xff]
    %v849 = vld [vmem:[#allocation10 + $0x60] sm:$0xff]
    %v850 = vld [vmem:[#allocation10 + $0x68] sm:$0xff]
    %v851 = vld [vmem:[#allocation10 + $0x70] sm:$0xff]
    %v852 = vld [vmem:[#allocation10 + $0x78] sm:$0xff]
    %v853 = vld [vmem:[%s9] sm:$0xff]
    %v854 = vld [vmem:[%s9 + $0x8] sm:$0xff]
    %855 = vmatpush.msra.mxu0 0.0
    %856 = vmatpush.msra.mxu0 0.0
    %857 = vmatpush.msra.mxu0 0.0
    %858 = vmatpush.msra.mxu0 0.0
    %859 = vmatpush.msra.mxu0 0.0
    %860 = vmatpush.msra.mxu0 0.0
    %861 = vmatpush.msra.mxu0 0.0
    %862 = vmatpush.msra.mxu0 0.0
    %863 = vmatpush.msra.mxu0 0.0
    %864 = vmatpush.msra.mxu0 0.0
    %865 = vmatpush.msra.mxu0 0.0
    %866 = vmatpush.msra.mxu0 0.0
    %867 = vmatpush.msra.mxu0 0.0
    %868 = vmatpush.msra.mxu0 0.0
    %869 = vmatpush.msra.mxu0 %v854
    %870 = vmatpush.msra.mxu0 %v853
    %871 = vmatmul.f32.gmra.mxu0 %v264
    %v872 = vpop.f32.mrf.mxu0
    %v873 = vadd.f32 0.0, %v872
    %874 = vmatmul.f32.gmra.mxu0 %v267
    %v875 = vpop.f32.mrf.mxu0
    %v876 = vadd.f32 0.0, %v875
    %877 = vmatmul.f32.gmra.mxu0 %v270
    %v878 = vpop.f32.mrf.mxu0
    %v879 = vadd.f32 0.0, %v878
    %880 = vmatmul.f32.gmra.mxu0 %v273
    %v881 = vpop.f32.mrf.mxu0
    %v882 = vadd.f32 0.0, %v881
    %883 = vmatmul.f32.gmra.mxu0 %v276
    %v884 = vpop.f32.mrf.mxu0
    %v885 = vadd.f32 0.0, %v884
    %886 = vmatmul.f32.gmra.mxu0 %v279
    %v887 = vpop.f32.mrf.mxu0
    %v888 = vadd.f32 0.0, %v887
    %889 = vmatmul.f32.gmra.mxu0 %v282
    %v890 = vpop.f32.mrf.mxu0
    %v891 = vadd.f32 0.0, %v890
    %892 = vmatmul.f32.gmra.mxu0 %v285
    %v893 = vpop.f32.mrf.mxu0
    %v894 = vadd.f32 0.0, %v893
    %895 = vdwg.mxu0
    %896 = vmatpush.msra.mxu0 %v852
    %897 = vmatpush.msra.mxu0 %v851
    %898 = vmatpush.msra.mxu0 %v850
    %899 = vmatpush.msra.mxu0 %v849
    %900 = vmatpush.msra.mxu0 %v848
    %901 = vmatpush.msra.mxu0 %v847
    %902 = vmatpush.msra.mxu0 %v846
    %903 = vmatpush.msra.mxu0 %v845
    %904 = vmatpush.msra.mxu0 %v844
    %905 = vmatpush.msra.mxu0 %v843
    %906 = vmatpush.msra.mxu0 %v842
    %907 = vmatpush.msra.mxu0 %v841
    %908 = vmatpush.msra.mxu0 %v840
    %909 = vmatpush.msra.mxu0 %v839
    %910 = vmatpush.msra.mxu0 %v838
    %911 = vmatpush.msra.mxu0 %v837
    %912 = vmatmul.f32.gmra.mxu0 %v829
    %v913 = vpop.f32.mrf.mxu0
    %v914 = vadd.f32 %v873, %v913
    %915 = vmatmul.f32.gmra.mxu0 %v830
    %v916 = vpop.f32.mrf.mxu0
    %v917 = vadd.f32 %v876, %v916
    %918 = vmatmul.f32.gmra.mxu0 %v831
    %v919 = vpop.f32.mrf.mxu0
    %v920 = vadd.f32 %v879, %v919
    %921 = vmatmul.f32.gmra.mxu0 %v832
    %v922 = vpop.f32.mrf.mxu0
    %v923 = vadd.f32 %v882, %v922
    %924 = vmatmul.f32.gmra.mxu0 %v833
    %v925 = vpop.f32.mrf.mxu0
    %v926 = vadd.f32 %v885, %v925
    %927 = vmatmul.f32.gmra.mxu0 %v834
    %v928 = vpop.f32.mrf.mxu0
    %v929 = vadd.f32 %v888, %v928
    %930 = vmatmul.f32.gmra.mxu0 %v835
    %v931 = vpop.f32.mrf.mxu0
    %v932 = vadd.f32 %v891, %v931
    %933 = vmatmul.f32.gmra.mxu0 %v836
    %v934 = vpop.f32.mrf.mxu0
    %v935 = vadd.f32 %v894, %v934
    %936 = vdwg.mxu0
    %v937 = vld [vmem:[%s10] sm:$0x1]
    %v939 = vperm.slane %v937, 0
    %v941 = vadd.f32 %v914, %v939
    %v942 = vadd.f32 %v917, %v939
    %v943 = vadd.f32 %v920, %v939
    %v944 = vadd.f32 %v923, %v939
    %v945 = vadd.f32 %v926, %v939
    %v946 = vadd.f32 %v929, %v939
    %v947 = vadd.f32 %v932, %v939
    %v948 = vadd.f32 %v935, %v939
    %v949 = vtanh.pop %v941
    %v950 = vtanh.pop %v942
    %v951 = vtanh.pop %v943
    %v952 = vtanh.pop %v944
    %v953 = vtanh.pop %v945
    %v954 = vtanh.pop %v946
    %v955 = vtanh.pop %v947
    %v956 = vtanh.pop %v948
    %v957 = vmax.f32 %v949, %v950
    %v958 = vmax.f32 %v957, %v951
    %v959 = vmax.f32 %v958, %v952
    %v960 = vmax.f32 %v959, %v953
    %v961 = vmax.f32 %v960, %v954
    %v962 = vmax.f32 %v961, %v955
    %v963 = vmax.f32 %v962, %v956
    %v964 = vld [vmem:[#allocation11] sm:$0xff]
    %v965 = vld [vmem:[#allocation11 + $0x8] sm:$0xff]
    %v966 = vld [vmem:[#allocation11 + $0x10] sm:$0xff]
    %v967 = vld [vmem:[#allocation11 + $0x18] sm:$0xff]
    %v968 = vld [vmem:[#allocation11 + $0x20] sm:$0xff]
    %v969 = vld [vmem:[#allocation11 + $0x28] sm:$0xff]
    %v970 = vld [vmem:[#allocation11 + $0x30] sm:$0xff]
    %v971 = vld [vmem:[#allocation11 + $0x38] sm:$0xff]
    %v972 = vld [vmem:[#allocation11 + $0x40] sm:$0xff]
    %v973 = vld [vmem:[#allocation11 + $0x48] sm:$0xff]
    %v974 = vld [vmem:[#allocation11 + $0x50] sm:$0xff]
    %v975 = vld [vmem:[#allocation11 + $0x58] sm:$0xff]
    %v976 = vld [vmem:[#allocation11 + $0x60] sm:$0xff]
    %v977 = vld [vmem:[#allocation11 + $0x68] sm:$0xff]
    %v978 = vld [vmem:[#allocation11 + $0x70] sm:$0xff]
    %v979 = vld [vmem:[#allocation11 + $0x78] sm:$0xff]
    %v980 = vld [vmem:[%s12] sm:$0x1]
    %v982 = vperm.slane %v980, 0
    %984 = vmatpush.msra.mxu0 %v979
    %985 = vmatpush.msra.mxu0 %v978
    %986 = vmatpush.msra.mxu0 %v977
    %987 = vmatpush.msra.mxu0 %v976
    %988 = vmatpush.msra.mxu0 %v975
    %989 = vmatpush.msra.mxu0 %v974
    %990 = vmatpush.msra.mxu0 %v973
    %991 = vmatpush.msra.mxu0 %v972
    %992 = vmatpush.msra.mxu0 %v971
    %993 = vmatpush.msra.mxu0 %v970
    %994 = vmatpush.msra.mxu0 %v969
    %995 = vmatpush.msra.mxu0 %v968
    %996 = vmatpush.msra.mxu0 %v967
    %997 = vmatpush.msra.mxu0 %v966
    %998 = vmatpush.msra.mxu0 %v965
    %999 = vmatpush.msra.mxu0 %v964
    %1000 = vmatmul.f32.gmra.mxu0 %v963
    %v1001 = vpop.f32.mrf.mxu0
    %v1002 = vadd.f32 %v982, %v1001
    %1003 = vdwg.mxu0
    %1004 = vst [vmem:[%s13] sm:$0xff] %v1002
    // Predicated region
    $region78: #{text_rnn_forward.1} parent=1 // pred_check
      _
    $region79: #{text_rnn_forward.1} parent=1 // pred_check_branch
      %1006 = sbr.rel (0) target = $region81
    $region80: #{text_rnn_forward.1} parent=1 // pred_region
      _
    $region81: #{text_rnn_forward.1} parent=1 // pred_fallthru
      _
    // Predicated region
    $region82: #{text_rnn_forward.1} parent=1 // pred_check
      _
    $region83: #{text_rnn_forward.1} parent=1 // pred_check_branch
      %1008 = sbr.rel (0) target = $region85
    $region84: #{text_rnn_forward.1} parent=1 // pred_region
      _
    $region85: #{text_rnn_forward.1} parent=1 // pred_fallthru
      _
    %1009 = vsyncpa [#allocation4], 1
    %1010 = vsyncpa [#allocation6], 1
    %1011 = vsyncpa [#allocation9], 1
    %1012 = vsyncpa [#allocation12], 1

</llo_original>
